<compile_context>
chip_gen: v6e
topology: v6e:2x2x1
jax: 0.10.0
libtpu: 0.0.40
codegen_flags: <defaults>
</compile_context>

<pallas_src>
import math

import jax
import jax.numpy as jnp
from jax import lax
from jax.experimental import pallas as pl
from jax.experimental.pallas import tpu as pltpu


# ----------------------------------------------------------------------------- embedding
def _emb_constants(dtype=jnp.float32):
    """Per-lane constants for the (., 32) embedding slab, built from an iota so
    no dense vector constants are needed inside the kernel.

    lanes  0..5  : cos(x0 * 2^k * pi)   (sin with +pi/2 phase)
    lanes  6..11 : sin(x0 * 2^k * pi)
    lanes 12..17 : cos(x1 * 2^k * pi)
    lanes 18..23 : sin(x1 * 2^k * pi)
    lanes 24..25 : raw x0, x1 passthrough
    lanes 26..31 : zero padding (matching zero rows in the padded w1)
    """
    lane = lax.broadcasted_iota(jnp.int32, (1, 32), 1)
    k = lane % 6
    freq = jnp.left_shift(jnp.int32(1), k).astype(dtype)          # 2**k, exact
    trig = lane < 24
    scale = jnp.where(trig, math.pi * freq, 0.0).astype(dtype)
    cos_lane = trig & ((lane % 12) < 6)
    phase = jnp.where(cos_lane, math.pi / 2.0, 0.0).astype(dtype)
    use_x1 = ((lane >= 12) & (lane < 24)) | (lane == 25)
    sel = use_x1.astype(dtype)
    passm = ((lane == 24) | (lane == 25)).astype(dtype)
    return sel, scale, phase, passm


def _embed_slab(x0, x1):
    """Lane-dense trig embedding: one sin over a (rows, 32) slab.
    Mathematically identical to hstack([cos_x, sin_x, cos_y, sin_y, x, 0-pad])."""
    sel, scale, phase, passm = _emb_constants()
    xsel = x0 + sel * (x1 - x0)                 # per-lane select between x0/x1
    return jnp.sin(xsel * scale + phase) + passm * xsel


# ----------------------------------------------------------------------------- kernel
def diffusion_kernel(xs_ref,
                     w1_ref, b1_ref, w2_ref, b2_ref,
                     w3_ref, b3_ref, w4_ref, b4_ref,
                     o_ref):
    xs = xs_ref[...]                            # (tb, 4) f32: [x0, x1, sigma, pad]
    x0 = xs[:, 0:1]
    x1 = xs[:, 1:2]
    sig = xs[:, 2:3]

    slab = _embed_slab(x0, x1)                  # (tb, 32) f32

    bf16 = jnp.bfloat16
    # Layer 1: 32 -> 256 (bf16 operands, f32 accumulation).
    h = jnp.dot(slab.astype(bf16), w1_ref[...],
                preferred_element_type=jnp.float32) + b1_ref[...]
    h = jnp.maximum(h, 0.0)
    # Layer 2: 256 -> 512.
    h = jnp.dot(h.astype(bf16), w2_ref[...],
                preferred_element_type=jnp.float32) + b2_ref[...]
    h = jnp.maximum(h, 0.0)
    # Layer 3: 512 -> 256.
    h = jnp.dot(h.astype(bf16), w3_ref[...],
                preferred_element_type=jnp.float32) + b3_ref[...]
    h = jnp.maximum(h, 0.0)
    # Layer 4: 256 -> 128 lanes (only lanes 0..1 are real outputs).
    out = jnp.dot(h.astype(bf16), w4_ref[...],
                  preferred_element_type=jnp.float32) + b4_ref[...]

    # Exact reciprocal (tb elements only) then a broadcast multiply.
    o_ref[...] = out * pl.reciprocal(sig)


# ----------------------------------------------------------------------------- wrappers
def _round_up(n, m):
    return ((n + m - 1) // m) * m


def prepare_params(params):
    """Zero-pad 26->32, 200->256, 400->512, 2->128 and cast weights to bf16.
    Weights are stored as (in_features, out_features): h @ W + b == PyTorch
    x @ W.T + b.  Padding is exact: padded units have zero weight/bias and zero
    downstream weights; padded output lanes are sliced off by the wrapper."""
    w1, b1, w2, b2, w3, b3, w4, b4 = params
    f32, bf16 = jnp.float32, jnp.bfloat16
    w1p = jnp.zeros((32, 256), f32).at[:26, :200].set(w1.astype(f32)).astype(bf16)
    b1p = jnp.zeros((1, 256), f32).at[0, :200].set(b1.astype(f32))
    w2p = jnp.zeros((256, 512), f32).at[:200, :400].set(w2.astype(f32)).astype(bf16)
    b2p = jnp.zeros((1, 512), f32).at[0, :400].set(b2.astype(f32))
    w3p = jnp.zeros((512, 256), f32).at[:400, :200].set(w3.astype(f32)).astype(bf16)
    b3p = jnp.zeros((1, 256), f32).at[0, :200].set(b3.astype(f32))
    w4p = jnp.zeros((256, 128), f32).at[:200, :2].set(w4.astype(f32)).astype(bf16)
    b4p = jnp.zeros((1, 128), f32).at[0, :2].set(b4.astype(f32))
    return w1p, b1p, w2p, b2p, w3p, b3p, w4p, b4p


def _choose_tile(B, tb):
    """Pick the batch tile: as big as possible, but >=2 tiles for v7x megacore
    when the batch is large enough that the split keeps tiles >=128 rows."""
    tb = max(8, min(int(tb), 4096))             # 4096 keeps v7x (64 MiB VMEM) safe
    B8 = _round_up(B, 8)
    tb_eff = min(tb, B8)
    if B8 <= tb_eff and B8 >= 256:
        tb_eff = _round_up((B8 + 1) // 2, 8)
    return tb_eff


def diffusion_forward(x, sigma, params, *, tb=1024):
    """x: (B, 2) f32, sigma: (B, 1) or (B,) f32.  Returns (B, 2) f32."""
    x = jnp.asarray(x, jnp.float32)
    sigma = jnp.asarray(sigma, jnp.float32).reshape(-1, 1)
    B = x.shape[0]

    tb_eff = _choose_tile(B, tb)
    Bp = _round_up(B, tb_eff)

    # Pack x and sigma into one lane-grouped input (one tiny per-step DMA).
    xs = jnp.zeros((Bp, 4), jnp.float32)
    xs = xs.at[:B, 0:2].set(x)
    xs = xs.at[:B, 2].set(sigma[:, 0])
    xs = xs.at[B:, 2].set(1.0)                  # benign sigma for padded rows

    w1p, b1p, w2p, b2p, w3p, b3p, w4p, b4p = prepare_params(params)

    row = lambda i: (i, 0)                      # batch-tiled operands
    rep = lambda i: (0, 0)                      # replicated weights
    full = lambda a: pl.BlockSpec(a.shape, rep)

    # Raise the scoped-VMEM cap for big tiles (f32 intermediates + double
    # buffers); 48 MiB stays below v7x's 64 MiB/TC physical VMEM.
    vmem_limit = (48 << 20) if tb_eff >= 1024 else None

    out = pl.pallas_call(
        diffusion_kernel,
        out_shape=jax.ShapeDtypeStruct((Bp, 128), jnp.float32),
        grid=(Bp // tb_eff,),
        in_specs=[
            pl.BlockSpec((tb_eff, 4), row),     # packed [x0, x1, sigma, pad]
            full(w1p), full(b1p),
            full(w2p), full(b2p),
            full(w3p), full(b3p),
            full(w4p), full(b4p),
        ],
        out_specs=pl.BlockSpec((tb_eff, 128), row),   # lane-dense, unmasked stores
        compiler_params=pltpu.CompilerParams(
            dimension_semantics=("parallel",),
            vmem_limit_bytes=vmem_limit),
    )(xs, w1p, b1p, w2p, b2p, w3p, b3p, w4p, b4p)
    return out[:B, :2]


# ----------------------------------------------------------------------------- references
def init_params(key):
    """PyTorch nn.Linear default init (U[-1/sqrt(in), 1/sqrt(in)]);
    weights stored as (in_features, out_features)."""
    dims = [(26, 200), (200, 400), (400, 200), (200, 2)]
    params = []
    keys = jax.random.split(key, 2 * len(dims))
    for i, (din, dout) in enumerate(dims):
        bound = 1.0 / math.sqrt(din)
        w = jax.random.uniform(keys[2 * i], (din, dout), jnp.float32, -bound, bound)
        b = jax.random.uniform(keys[2 * i + 1], (dout,), jnp.float32, -bound, bound)
        params += [w, b]
    return tuple(params)


def reference_forward(x, sigma, params):
    """Pure-JAX f32 reference reproducing the PyTorch forward exactly."""
    w1, b1, w2, b2, w3, b3, w4, b4 = params
    freqs = 2.0 ** jnp.linspace(0.0, 5.0, 6)
    pi = math.pi
    x_cos = jnp.cos(jnp.outer(x[:, 0], freqs) * pi)
    x_sin = jnp.sin(jnp.outer(x[:, 0], freqs) * pi)
    y_cos = jnp.cos(jnp.outer(x[:, 1], freqs) * pi)
    y_sin = jnp.sin(jnp.outer(x[:, 1], freqs) * pi)
    new_x = jnp.hstack([x_cos, x_sin, y_cos, y_sin, x])
    h = jax.nn.relu(new_x @ w1 + b1)
    h = jax.nn.relu(h @ w2 + b2)
    h = jax.nn.relu(h @ w3 + b3)
    out = h @ w4 + b4
    return out / sigma


def reference_forward_matched(x, sigma, prepped):
    """Reference that mirrors the kernel's numerics (padded weights, bf16
    operands / f32 accumulation, same slab construction) for a tight check."""
    w1p, b1p, w2p, b2p, w3p, b3p, w4p, b4p = prepped
    x = jnp.asarray(x, jnp.float32)
    sigma = jnp.asarray(sigma, jnp.float32).reshape(-1, 1)
    bf16, f32 = jnp.bfloat16, jnp.float32
    slab = _embed_slab(x[:, 0:1], x[:, 1:2])
    h = jax.nn.relu(jnp.dot(slab.astype(bf16), w1p, preferred_element_type=f32) + b1p)
    h = jax.nn.relu(jnp.dot(h.astype(bf16), w2p, preferred_element_type=f32) + b2p)
    h = jax.nn.relu(jnp.dot(h.astype(bf16), w3p, preferred_element_type=f32) + b3p)
    out = jnp.dot(h.astype(bf16), w4p, preferred_element_type=f32) + b4p
    return (out / sigma)[:, :2]


# ----------------------------------------------------------------------------- main
if __name__ == "__main__":
    key = jax.random.PRNGKey(0)
    k_param, k_x, k_sig = jax.random.split(key, 3)

    params = init_params(k_param)
    prepped = prepare_params(params)

    # B=8: single tiny tile.  B=300: 2 tiles of 152 (megacore split + padding).
    # B=2500: 3 tiles of 1024 (large-tile path with raised VMEM limit).
    for B in (8, 300, 2500):
        x = jax.random.normal(jax.random.fold_in(k_x, B), (B, 2), jnp.float32)
        sigma = jax.random.uniform(jax.random.fold_in(k_sig, B), (B, 1),
                                   jnp.float32, 0.5, 1.5)
        out = jax.block_until_ready(diffusion_forward(x, sigma, params))
        assert out.shape == (B, 2)

        # Loose check vs. the exact f32 PyTorch-equivalent reference
        # (bf16 matmul operands bound the agreement).
        ref_f32 = reference_forward(x, sigma, params)
        err_f32 = float(jnp.max(jnp.abs(out - ref_f32)))
        assert jnp.allclose(out, ref_f32, atol=5e-2, rtol=5e-2), (B, err_f32)

        # Tight check vs. a reference with matched (bf16/padded) numerics.
        ref_bf = reference_forward_matched(x, sigma, prepped)
        err_bf = float(jnp.max(jnp.abs(out - ref_bf)))
        assert jnp.allclose(out, ref_bf, atol=1e-2, rtol=1e-2), (B, err_bf)

    print("KERNEL_OK")
</pallas_src>

<mosaic_0001>
module attributes {stable_mosaic.version = 11 : i64} {
  func.func @diffusion_kernel(%arg0: i32, %arg1: memref<8x4xf32, #tpu.memory_space<vmem>>, %arg2: memref<32x256xbf16, #tpu.memory_space<vmem>>, %arg3: memref<1x256xf32, #tpu.memory_space<vmem>>, %arg4: memref<256x512xbf16, #tpu.memory_space<vmem>>, %arg5: memref<1x512xf32, #tpu.memory_space<vmem>>, %arg6: memref<512x256xbf16, #tpu.memory_space<vmem>>, %arg7: memref<1x256xf32, #tpu.memory_space<vmem>>, %arg8: memref<256x128xbf16, #tpu.memory_space<vmem>>, %arg9: memref<1x128xf32, #tpu.memory_space<vmem>>, %arg10: memref<8x128xf32, #tpu.memory_space<vmem>>) attributes {dimension_semantics = [#tpu.dimension_semantics<parallel>], iteration_bounds = array<i64: 1>, scalar_prefetch = 0 : i64, scratch_operands = 0 : i64, tpu.core_type = #tpu.core_type<tc>, window_params = [{transform_indices = @transform_0, window_bounds = array<i64: 8, 4>}, {pipeline_mode = #tpu.pipeline_mode<synchronous>, transform_indices = @transform_1, window_bounds = array<i64: 32, 256>}, {pipeline_mode = #tpu.pipeline_mode<synchronous>, transform_indices = @transform_2, window_bounds = array<i64: 1, 256>}, {pipeline_mode = #tpu.pipeline_mode<synchronous>, transform_indices = @transform_3, window_bounds = array<i64: 256, 512>}, {pipeline_mode = #tpu.pipeline_mode<synchronous>, transform_indices = @transform_4, window_bounds = array<i64: 1, 512>}, {pipeline_mode = #tpu.pipeline_mode<synchronous>, transform_indices = @transform_5, window_bounds = array<i64: 512, 256>}, {pipeline_mode = #tpu.pipeline_mode<synchronous>, transform_indices = @transform_6, window_bounds = array<i64: 1, 256>}, {pipeline_mode = #tpu.pipeline_mode<synchronous>, transform_indices = @transform_7, window_bounds = array<i64: 256, 128>}, {pipeline_mode = #tpu.pipeline_mode<synchronous>, transform_indices = @transform_8, window_bounds = array<i64: 1, 128>}, {transform_indices = @transform_9, window_bounds = array<i64: 8, 128>}]} {
    %c0 = arith.constant 0 : index
    %c0_0 = arith.constant 0 : index
    %0 = vector.load %arg1[%c0, %c0_0] : memref<8x4xf32, #tpu.memory_space<vmem>>, vector<8x4xf32>
    %1 = vector.extract_strided_slice %0 {offsets = [0, 0], sizes = [8, 1], strides = [1, 1]} : vector<8x4xf32> to vector<8x1xf32>
    %2 = vector.extract_strided_slice %0 {offsets = [0, 1], sizes = [8, 1], strides = [1, 1]} : vector<8x4xf32> to vector<8x1xf32>
    %3 = vector.extract_strided_slice %0 {offsets = [0, 2], sizes = [8, 1], strides = [1, 1]} : vector<8x4xf32> to vector<8x1xf32>
    %4 = tpu.iota {dimensions = array<i32: 1>} : vector<1x32xi32>
    %c6_i32 = arith.constant 6 : i32
    %c0_i32 = arith.constant 0 : i32
    %5 = arith.cmpi eq, %c6_i32, %c0_i32 : i32
    %c1_i32 = arith.constant 1 : i32
    %6 = arith.select %5, %c1_i32, %c6_i32 : i32
    %7 = vector.broadcast %6 : i32 to vector<1x32xi32>
    %8 = arith.remsi %4, %7 : vector<1x32xi32>
    %c0_i32_1 = arith.constant 0 : i32
    %9 = vector.broadcast %c0_i32_1 : i32 to vector<1x32xi32>
    %10 = arith.cmpi ne, %8, %9 : vector<1x32xi32>
    %c0_i32_2 = arith.constant 0 : i32
    %11 = vector.broadcast %c0_i32_2 : i32 to vector<1x32xi32>
    %12 = arith.cmpi slt, %8, %11 : vector<1x32xi32>
    %c0_i32_3 = arith.constant 0 : i32
    %13 = arith.cmpi slt, %6, %c0_i32_3 : i32
    %14 = vector.broadcast %13 : i1 to vector<1x32xi1>
    %15 = vector.broadcast %14 : vector<1x32xi1> to vector<1x32xi1>
    %16 = arith.xori %12, %15 : vector<1x32xi1>
    %17 = arith.andi %16, %10 : vector<1x32xi1>
    %18 = vector.broadcast %6 : i32 to vector<1x32xi32>
    %19 = arith.addi %8, %18 : vector<1x32xi32>
    %20 = arith.select %17, %19, %8 : vector<1x32xi1>, vector<1x32xi32>
    %c1_i32_4 = arith.constant 1 : i32
    %21 = vector.broadcast %c1_i32_4 : i32 to vector<1x32xi32>
    %22 = arith.shli %21, %20 : vector<1x32xi32>
    %23 = arith.sitofp %22 : vector<1x32xi32> to vector<1x32xf32>
    %c24_i32 = arith.constant 24 : i32
    %24 = vector.broadcast %c24_i32 : i32 to vector<1x32xi32>
    %25 = arith.cmpi slt, %4, %24 : vector<1x32xi32>
    %cst = arith.constant 3.14159274 : f32
    %26 = vector.broadcast %cst : f32 to vector<1x32xf32>
    %27 = arith.mulf %26, %23 : vector<1x32xf32>
    %cst_5 = arith.constant 0.000000e+00 : f32
    %28 = vector.broadcast %cst_5 : f32 to vector<1x32xf32>
    %29 = arith.select %25, %27, %28 : vector<1x32xi1>, vector<1x32xf32>
    %c12_i32 = arith.constant 12 : i32
    %c0_i32_6 = arith.constant 0 : i32
    %30 = arith.cmpi eq, %c12_i32, %c0_i32_6 : i32
    %c1_i32_7 = arith.constant 1 : i32
    %31 = arith.select %30, %c1_i32_7, %c12_i32 : i32
    %32 = vector.broadcast %31 : i32 to vector<1x32xi32>
    %33 = arith.remsi %4, %32 : vector<1x32xi32>
    %c0_i32_8 = arith.constant 0 : i32
    %34 = vector.broadcast %c0_i32_8 : i32 to vector<1x32xi32>
    %35 = arith.cmpi ne, %33, %34 : vector<1x32xi32>
    %c0_i32_9 = arith.constant 0 : i32
    %36 = vector.broadcast %c0_i32_9 : i32 to vector<1x32xi32>
    %37 = arith.cmpi slt, %33, %36 : vector<1x32xi32>
    %c0_i32_10 = arith.constant 0 : i32
    %38 = arith.cmpi slt, %31, %c0_i32_10 : i32
    %39 = vector.broadcast %38 : i1 to vector<1x32xi1>
    %40 = vector.broadcast %39 : vector<1x32xi1> to vector<1x32xi1>
    %41 = arith.xori %37, %40 : vector<1x32xi1>
    %42 = arith.andi %41, %35 : vector<1x32xi1>
    %43 = vector.broadcast %31 : i32 to vector<1x32xi32>
    %44 = arith.addi %33, %43 : vector<1x32xi32>
    %45 = arith.select %42, %44, %33 : vector<1x32xi1>, vector<1x32xi32>
    %c6_i32_11 = arith.constant 6 : i32
    %46 = vector.broadcast %c6_i32_11 : i32 to vector<1x32xi32>
    %47 = arith.cmpi slt, %45, %46 : vector<1x32xi32>
    %48 = arith.andi %25, %47 : vector<1x32xi1>
    %cst_12 = arith.constant 1.57079637 : f32
    %cst_13 = arith.constant 0.000000e+00 : f32
    %49 = vector.broadcast %cst_12 : f32 to vector<1x32xf32>
    %50 = vector.broadcast %cst_13 : f32 to vector<1x32xf32>
    %51 = arith.select %48, %49, %50 : vector<1x32xi1>, vector<1x32xf32>
    %c12_i32_14 = arith.constant 12 : i32
    %52 = vector.broadcast %c12_i32_14 : i32 to vector<1x32xi32>
    %53 = arith.cmpi sge, %4, %52 : vector<1x32xi32>
    %c24_i32_15 = arith.constant 24 : i32
    %54 = vector.broadcast %c24_i32_15 : i32 to vector<1x32xi32>
    %55 = arith.cmpi slt, %4, %54 : vector<1x32xi32>
    %56 = arith.andi %53, %55 : vector<1x32xi1>
    %c25_i32 = arith.constant 25 : i32
    %57 = vector.broadcast %c25_i32 : i32 to vector<1x32xi32>
    %58 = arith.cmpi eq, %4, %57 : vector<1x32xi32>
    %59 = arith.ori %56, %58 : vector<1x32xi1>
    %60 = arith.extui %59 : vector<1x32xi1> to vector<1x32xi32>
    %61 = arith.sitofp %60 : vector<1x32xi32> to vector<1x32xf32>
    %c24_i32_16 = arith.constant 24 : i32
    %62 = vector.broadcast %c24_i32_16 : i32 to vector<1x32xi32>
    %63 = arith.cmpi eq, %4, %62 : vector<1x32xi32>
    %c25_i32_17 = arith.constant 25 : i32
    %64 = vector.broadcast %c25_i32_17 : i32 to vector<1x32xi32>
    %65 = arith.cmpi eq, %4, %64 : vector<1x32xi32>
    %66 = arith.ori %63, %65 : vector<1x32xi1>
    %67 = arith.extui %66 : vector<1x32xi1> to vector<1x32xi32>
    %68 = arith.sitofp %67 : vector<1x32xi32> to vector<1x32xf32>
    %69 = arith.subf %2, %1 : vector<8x1xf32>
    %70 = vector.broadcast %61 : vector<1x32xf32> to vector<8x32xf32>
    %71 = vector.broadcast %69 : vector<8x1xf32> to vector<8x32xf32>
    %72 = arith.mulf %70, %71 : vector<8x32xf32>
    %73 = vector.broadcast %1 : vector<8x1xf32> to vector<8x32xf32>
    %74 = arith.addf %73, %72 : vector<8x32xf32>
    %75 = vector.broadcast %29 : vector<1x32xf32> to vector<8x32xf32>
    %76 = arith.mulf %74, %75 : vector<8x32xf32>
    %77 = vector.broadcast %51 : vector<1x32xf32> to vector<8x32xf32>
    %78 = arith.addf %76, %77 : vector<8x32xf32>
    %79 = math.sin %78 : vector<8x32xf32>
    %80 = vector.broadcast %68 : vector<1x32xf32> to vector<8x32xf32>
    %81 = arith.mulf %80, %74 : vector<8x32xf32>
    %82 = arith.addf %79, %81 : vector<8x32xf32>
    %83 = arith.truncf %82 : vector<8x32xf32> to vector<8x32xbf16>
    %c0_18 = arith.constant 0 : index
    %c0_19 = arith.constant 0 : index
    %84 = vector.load %arg2[%c0_18, %c0_19] : memref<32x256xbf16, #tpu.memory_space<vmem>>, vector<32x256xbf16>
    %cst_20 = arith.constant dense<0.000000e+00> : vector<8x256xf32>
    %85 = tpu.matmul %83, %84, %cst_20 {dimension_numbers = #tpu.dot_dimension_numbers<[1], [0], [0], [1], [0, 0, 1, 1], [], []>} : vector<8x32xbf16>, vector<32x256xbf16>, vector<8x256xf32> -> vector<8x256xf32>
    %c0_21 = arith.constant 0 : index
    %c0_22 = arith.constant 0 : index
    %86 = vector.load %arg3[%c0_21, %c0_22] : memref<1x256xf32, #tpu.memory_space<vmem>>, vector<1x256xf32>
    %87 = vector.broadcast %86 : vector<1x256xf32> to vector<8x256xf32>
    %88 = arith.addf %85, %87 : vector<8x256xf32>
    %cst_23 = arith.constant 0.000000e+00 : f32
    %89 = vector.broadcast %cst_23 : f32 to vector<8x256xf32>
    %90 = arith.maximumf %88, %89 : vector<8x256xf32>
    %91 = arith.truncf %90 : vector<8x256xf32> to vector<8x256xbf16>
    %c0_24 = arith.constant 0 : index
    %c0_25 = arith.constant 0 : index
    %92 = vector.load %arg4[%c0_24, %c0_25] : memref<256x512xbf16, #tpu.memory_space<vmem>>, vector<256x512xbf16>
    %cst_26 = arith.constant dense<0.000000e+00> : vector<8x512xf32>
    %93 = tpu.matmul %91, %92, %cst_26 {dimension_numbers = #tpu.dot_dimension_numbers<[1], [0], [0], [1], [0, 0, 1, 1], [], []>} : vector<8x256xbf16>, vector<256x512xbf16>, vector<8x512xf32> -> vector<8x512xf32>
    %c0_27 = arith.constant 0 : index
    %c0_28 = arith.constant 0 : index
    %94 = vector.load %arg5[%c0_27, %c0_28] : memref<1x512xf32, #tpu.memory_space<vmem>>, vector<1x512xf32>
    %95 = vector.broadcast %94 : vector<1x512xf32> to vector<8x512xf32>
    %96 = arith.addf %93, %95 : vector<8x512xf32>
    %cst_29 = arith.constant 0.000000e+00 : f32
    %97 = vector.broadcast %cst_29 : f32 to vector<8x512xf32>
    %98 = arith.maximumf %96, %97 : vector<8x512xf32>
    %99 = arith.truncf %98 : vector<8x512xf32> to vector<8x512xbf16>
    %c0_30 = arith.constant 0 : index
    %c0_31 = arith.constant 0 : index
    %100 = vector.load %arg6[%c0_30, %c0_31] : memref<512x256xbf16, #tpu.memory_space<vmem>>, vector<512x256xbf16>
    %cst_32 = arith.constant dense<0.000000e+00> : vector<8x256xf32>
    %101 = tpu.matmul %99, %100, %cst_32 {dimension_numbers = #tpu.dot_dimension_numbers<[1], [0], [0], [1], [0, 0, 1, 1], [], []>} : vector<8x512xbf16>, vector<512x256xbf16>, vector<8x256xf32> -> vector<8x256xf32>
    %c0_33 = arith.constant 0 : index
    %c0_34 = arith.constant 0 : index
    %102 = vector.load %arg7[%c0_33, %c0_34] : memref<1x256xf32, #tpu.memory_space<vmem>>, vector<1x256xf32>
    %103 = vector.broadcast %102 : vector<1x256xf32> to vector<8x256xf32>
    %104 = arith.addf %101, %103 : vector<8x256xf32>
    %cst_35 = arith.constant 0.000000e+00 : f32
    %105 = vector.broadcast %cst_35 : f32 to vector<8x256xf32>
    %106 = arith.maximumf %104, %105 : vector<8x256xf32>
    %107 = arith.truncf %106 : vector<8x256xf32> to vector<8x256xbf16>
    %c0_36 = arith.constant 0 : index
    %c0_37 = arith.constant 0 : index
    %108 = vector.load %arg8[%c0_36, %c0_37] : memref<256x128xbf16, #tpu.memory_space<vmem>>, vector<256x128xbf16>
    %cst_38 = arith.constant dense<0.000000e+00> : vector<8x128xf32>
    %109 = tpu.matmul %107, %108, %cst_38 {dimension_numbers = #tpu.dot_dimension_numbers<[1], [0], [0], [1], [0, 0, 1, 1], [], []>} : vector<8x256xbf16>, vector<256x128xbf16>, vector<8x128xf32> -> vector<8x128xf32>
    %c0_39 = arith.constant 0 : index
    %c0_40 = arith.constant 0 : index
    %110 = vector.load %arg9[%c0_39, %c0_40] : memref<1x128xf32, #tpu.memory_space<vmem>>, vector<1x128xf32>
    %111 = vector.broadcast %110 : vector<1x128xf32> to vector<8x128xf32>
    %112 = arith.addf %109, %111 : vector<8x128xf32>
    %113 = tpu.reciprocal %3 : vector<8x1xf32> -> vector<8x1xf32>
    %114 = vector.broadcast %113 : vector<8x1xf32> to vector<8x128xf32>
    %115 = arith.mulf %112, %114 : vector<8x128xf32>
    %c0_41 = arith.constant 0 : index
    %c0_42 = arith.constant 0 : index
    %116 = vector.load %arg10[%c0_41, %c0_42] : memref<8x128xf32, #tpu.memory_space<vmem>>, vector<8x128xf32>
    tpu.vector_store %arg10[%c0_41, %c0_42], %115 {strides = array<i32>} : memref<8x128xf32, #tpu.memory_space<vmem>>, vector<8x128xf32>,
    return
  }
  func.func @transform_0(%arg0: i32) -> (i32, i32) {
    %c0_i32 = arith.constant 0 : i32
    %c0_i32_0 = arith.constant 0 : i32
    return %arg0, %c0_i32 : i32, i32
  }
  func.func @transform_1(%arg0: i32) -> (i32, i32) {
    %c0_i32 = arith.constant 0 : i32
    %c0_i32_0 = arith.constant 0 : i32
    %c0_i32_1 = arith.constant 0 : i32
    return %c0_i32, %c0_i32_0 : i32, i32
  }
  func.func @transform_2(%arg0: i32) -> (i32, i32) {
    %c0_i32 = arith.constant 0 : i32
    %c0_i32_0 = arith.constant 0 : i32
    %c0_i32_1 = arith.constant 0 : i32
    return %c0_i32, %c0_i32_0 : i32, i32
  }
  func.func @transform_3(%arg0: i32) -> (i32, i32) {
    %c0_i32 = arith.constant 0 : i32
    %c0_i32_0 = arith.constant 0 : i32
    %c0_i32_1 = arith.constant 0 : i32
    return %c0_i32, %c0_i32_0 : i32, i32
  }
  func.func @transform_4(%arg0: i32) -> (i32, i32) {
    %c0_i32 = arith.constant 0 : i32
    %c0_i32_0 = arith.constant 0 : i32
    %c0_i32_1 = arith.constant 0 : i32
    return %c0_i32, %c0_i32_0 : i32, i32
  }
  func.func @transform_5(%arg0: i32) -> (i32, i32) {
    %c0_i32 = arith.constant 0 : i32
    %c0_i32_0 = arith.constant 0 : i32
    %c0_i32_1 = arith.constant 0 : i32
    return %c0_i32, %c0_i32_0 : i32, i32
  }
  func.func @transform_6(%arg0: i32) -> (i32, i32) {
    %c0_i32 = arith.constant 0 : i32
    %c0_i32_0 = arith.constant 0 : i32
    %c0_i32_1 = arith.constant 0 : i32
    return %c0_i32, %c0_i32_0 : i32, i32
  }
  func.func @transform_7(%arg0: i32) -> (i32, i32) {
    %c0_i32 = arith.constant 0 : i32
    %c0_i32_0 = arith.constant 0 : i32
    %c0_i32_1 = arith.constant 0 : i32
    return %c0_i32, %c0_i32_0 : i32, i32
  }
  func.func @transform_8(%arg0: i32) -> (i32, i32) {
    %c0_i32 = arith.constant 0 : i32
    %c0_i32_0 = arith.constant 0 : i32
    %c0_i32_1 = arith.constant 0 : i32
    return %c0_i32, %c0_i32_0 : i32, i32
  }
  func.func @transform_9(%arg0: i32) -> (i32, i32) {
    %c0_i32 = arith.constant 0 : i32
    %c0_i32_0 = arith.constant 0 : i32
    return %arg0, %c0_i32 : i32, i32
  }
}

</mosaic_0001>

<llo_original>
// kernel: tpu_custom_call.1
$region0: #{tpu_custom_call.1}
  #allocation0 [shape = 'u32[]', space=smem, size = 0x4, offset = 0x4, fixed_abs, tag = 'smem constant byte address 0x4 - core index']
  #allocation1 [shape = 'u32[144,128]{1,0:T(1,128)}', space=vmem, size = 0x12000, scoped, tag = 'internal scratch']
  %s0 = inlined_call_operand.vmem [shape: f32[8,4], index: 0, kind: input, shape index: {}]
  %s1 = inlined_call_operand.hbm [shape: bf16[32,256], index: 1, kind: input, shape index: {}]
  %s2 = inlined_call_operand.vmem [shape: f32[1,256], index: 2, kind: input, shape index: {}]
  %s3 = inlined_call_operand.hbm [shape: bf16[256,512], index: 3, kind: input, shape index: {}]
  %s4 = inlined_call_operand.vmem [shape: f32[1,512], index: 4, kind: input, shape index: {}]
  %s5 = inlined_call_operand.hbm [shape: bf16[512,256], index: 5, kind: input, shape index: {}]
  %s6 = inlined_call_operand.vmem [shape: f32[1,256], index: 6, kind: input, shape index: {}]
  %s7 = inlined_call_operand.hbm [shape: bf16[256,128], index: 7, kind: input, shape index: {}]
  %s8 = inlined_call_operand.vmem [shape: f32[1,128], index: 8, kind: input, shape index: {}]
  %s9 = inlined_call_operand.hbm [shape: f32[8,128], index: 9, kind: output, shape index: {}]
  %s10 = sld [smem:[#allocation0]]
  $region62: #{tpu_custom_call.1} parent=0
    _
  %s12 = ssub.s32 1, %s10
  %s13 = scalar_select 0, %s12, %s10
  $region1: #{tpu_custom_call.1} parent=0
    #allocation2 [shape = 'u8[16384]{0}', space=vmem, size = 0x4000, scoped, tag = 'input window, operand 1, single buffered']
    #allocation3 [shape = 's32[1]{0}', space=sflag, size = 0x4, scoped, tag = 'scoped memory for tpu_custom_call.1']
    #allocation4 [shape = 's32[1]{0}', space=sflag, size = 0x4, scoped, tag = 'scoped memory for tpu_custom_call.1']
    #allocation5 [shape = 'u8[262144]{0}', space=vmem, size = 0x40000, scoped, tag = 'input window, operand 3, single buffered']
    #allocation6 [shape = 's32[1]{0}', space=sflag, size = 0x4, scoped, tag = 'scoped memory for tpu_custom_call.1']
    #allocation7 [shape = 'u8[262144]{0}', space=vmem, size = 0x40000, scoped, tag = 'input window, operand 5, single buffered']
    #allocation8 [shape = 'u8[65536]{0}', space=vmem, size = 0x10000, scoped, tag = 'input window, operand 7, single buffered']
    #allocation9 [shape = 's32[1]{0}', space=sflag, size = 0x4, scoped, tag = 'scoped memory for tpu_custom_call.1']
    #allocation10 [shape = 'u8[4096]{0}', space=vmem, size = 0x1000, scoped, tag = 'output window, operand 0, single buffered']
    %14 = vsyncpa [#allocation3], 0
    %15 = vsyncpa [#allocation6], 0
    %16 = vsyncpa [#allocation9], 0
    %17 = vsyncpa [#allocation4], 0
    // Predicated region
    $region2: #{tpu_custom_call.1} parent=1 // pred_check
      _
    $region3: #{tpu_custom_call.1} parent=1 // pred_check_branch
      %19 = sbr.rel (0) target = $region5
    $region4: #{tpu_custom_call.1} parent=1 // pred_region
      _
    $region5: #{tpu_custom_call.1} parent=1 // pred_fallthru
      _
    // Predicated region
    $region6: #{tpu_custom_call.1} parent=1 // pred_check
      _
    $region7: #{tpu_custom_call.1} parent=1 // pred_check_branch
      %21 = sbr.rel (0) target = $region9
    $region8: #{tpu_custom_call.1} parent=1 // pred_region
      %s23 = ssub.s32 512, 512
      %24 = vsyncadd [#allocation3], %s23
      %s25 = sshll.u32 [#allocation2], 4
      %s26 = int_to_ptr.vmem [resolvable:$true] %s25
      %31 = dma.hbm_to_vmem [thread:$0]  %s1, 512, %s26, [#allocation3], 128, 128, 8
    $region9: #{tpu_custom_call.1} parent=1 // pred_fallthru
      _
    // Predicated region
    $region10: #{tpu_custom_call.1} parent=1 // pred_check
      _
    $region11: #{tpu_custom_call.1} parent=1 // pred_check_branch
      %33 = sbr.rel (0) target = $region13
    $region12: #{tpu_custom_call.1} parent=1 // pred_region
      _
    $region13: #{tpu_custom_call.1} parent=1 // pred_fallthru
      _
    // Predicated region
    $region14: #{tpu_custom_call.1} parent=1 // pred_check
      _
    $region15: #{tpu_custom_call.1} parent=1 // pred_check_branch
      %35 = sbr.rel (0) target = $region17
    $region16: #{tpu_custom_call.1} parent=1 // pred_region
      %s37 = ssub.s32 8192, 8192
      %38 = vsyncadd [#allocation6], %s37
      %s39 = sshll.u32 [#allocation5], 4
      %s40 = int_to_ptr.vmem [resolvable:$true] %s39
      %45 = dma.hbm_to_vmem [thread:$0]  %s3, 8192, %s40, [#allocation6], 256, 256, 16
    $region17: #{tpu_custom_call.1} parent=1 // pred_fallthru
      _
    // Predicated region
    $region18: #{tpu_custom_call.1} parent=1 // pred_check
      _
    $region19: #{tpu_custom_call.1} parent=1 // pred_check_branch
      %47 = sbr.rel (0) target = $region21
    $region20: #{tpu_custom_call.1} parent=1 // pred_region
      _
    $region21: #{tpu_custom_call.1} parent=1 // pred_fallthru
      _
    // Predicated region
    $region22: #{tpu_custom_call.1} parent=1 // pred_check
      _
    $region23: #{tpu_custom_call.1} parent=1 // pred_check_branch
      %49 = sbr.rel (0) target = $region25
    $region24: #{tpu_custom_call.1} parent=1 // pred_region
      %s51 = ssub.s32 8192, 8192
      %52 = vsyncadd [#allocation6], %s51
      %s53 = sshll.u32 [#allocation7], 4
      %s54 = int_to_ptr.vmem [resolvable:$true] %s53
      %59 = dma.hbm_to_vmem [thread:$0]  %s5, 8192, %s54, [#allocation6], 128, 128, 8
    $region25: #{tpu_custom_call.1} parent=1 // pred_fallthru
      _
    // Predicated region
    $region26: #{tpu_custom_call.1} parent=1 // pred_check
      _
    $region27: #{tpu_custom_call.1} parent=1 // pred_check_branch
      %61 = sbr.rel (0) target = $region29
    $region28: #{tpu_custom_call.1} parent=1 // pred_region
      _
    $region29: #{tpu_custom_call.1} parent=1 // pred_fallthru
      _
    // Predicated region
    $region30: #{tpu_custom_call.1} parent=1 // pred_check
      _
    $region31: #{tpu_custom_call.1} parent=1 // pred_check_branch
      %63 = sbr.rel (0) target = $region33
    $region32: #{tpu_custom_call.1} parent=1 // pred_region
      %s65 = ssub.s32 2048, 2048
      %66 = vsyncadd [#allocation9], %s65
      %s67 = sshll.u32 [#allocation8], 4
      %s68 = int_to_ptr.vmem [resolvable:$true] %s67
      %73 = dma.hbm_to_vmem [thread:$0]  %s7, 2048, %s68, [#allocation9], 64, 64, 4
    $region33: #{tpu_custom_call.1} parent=1 // pred_fallthru
      _
    // Predicated region
    $region34: #{tpu_custom_call.1} parent=1 // pred_check
      _
    $region35: #{tpu_custom_call.1} parent=1 // pred_check_branch
      %75 = sbr.rel (0) target = $region37
    $region36: #{tpu_custom_call.1} parent=1 // pred_region
      _
    $region37: #{tpu_custom_call.1} parent=1 // pred_fallthru
      _
    // Predicated region
    $region38: #{tpu_custom_call.1} parent=1 // pred_check
      _
    $region39: #{tpu_custom_call.1} parent=1 // pred_check_branch
      %77 = sbr.rel (0) target = $region41
    $region40: #{tpu_custom_call.1} parent=1 // pred_region
      %78 = dma.done [#allocation3], 512
    $region41: #{tpu_custom_call.1} parent=1 // pred_fallthru
      _
    // Predicated region
    $region42: #{tpu_custom_call.1} parent=1 // pred_check
      _
    $region43: #{tpu_custom_call.1} parent=1 // pred_check_branch
      %80 = sbr.rel (0) target = $region45
    $region44: #{tpu_custom_call.1} parent=1 // pred_region
      %81 = dma.done [#allocation6], 8192
    $region45: #{tpu_custom_call.1} parent=1 // pred_fallthru
      _
    // Predicated region
    $region46: #{tpu_custom_call.1} parent=1 // pred_check
      _
    $region47: #{tpu_custom_call.1} parent=1 // pred_check_branch
      %83 = sbr.rel (0) target = $region49
    $region48: #{tpu_custom_call.1} parent=1 // pred_region
      %84 = dma.done [#allocation6], 8192
    $region49: #{tpu_custom_call.1} parent=1 // pred_fallthru
      _
    // Predicated region
    $region50: #{tpu_custom_call.1} parent=1 // pred_check
      _
    $region51: #{tpu_custom_call.1} parent=1 // pred_check_branch
      %86 = sbr.rel (0) target = $region53
    $region52: #{tpu_custom_call.1} parent=1 // pred_region
      %87 = dma.done [#allocation9], 2048
    $region53: #{tpu_custom_call.1} parent=1 // pred_fallthru
      _
    %v89 = vld [vmem:[%s0] sm:$0xff]
    %v90 = vlaneseq
    %v91 = vand.u32 %v90, 127
    %vm92 = vcmp.lt.s32.totalorder %v91, 0
    %v93 = vsub.s32 0, %v91
    %v94 = vsel %vm92, %v93, %v91
    %v95 = vmul.u32.u64.compose %v94, 2863311531
    %v96 = vextract.low.u32 %v95
    %v97 = vextract.high.u32 %v95
    %v98 = vshrl.u32 %v97, 2
    %v99 = vmul.u32 %v98, 6
    %v100 = vsub.s32 %v94, %v99
    %v101 = vsub.s32 0, %v100
    %v102 = vsel %vm92, %v101, %v100
    %vm103 = vcmp.ne.s32.totalorder %v102, 0
    %vm104 = vcmp.lt.s32.totalorder %v102, 0
    %vm105 = vmand %vm104, %vm103
    %v106 = vadd.s32 %v102, 6
    %v107 = vsel %vm105, %v106, %v102
    %v108 = vshll.u32 1, %v107
    %v109 = vcvt.s32.f32 %v108
    %vm110 = vcmp.lt.s32.totalorder %v91, 24
    %v111 = vmul.f32 %v109, 3.1415927
    %v112 = vsel %vm110, %v111, 0.0
    %vm113 = vcmp.lt.s32.totalorder %v91, 0
    %v114 = vsub.s32 0, %v91
    %v115 = vsel %vm113, %v114, %v91
    %v116 = vmul.u32.u64.compose %v115, 2863311531
    %v117 = vextract.low.u32 %v116
    %v118 = vextract.high.u32 %v116
    %v119 = vshrl.u32 %v118, 3
    %v120 = vmul.u32 %v119, 12
    %v121 = vsub.s32 %v115, %v120
    %v122 = vsub.s32 0, %v121
    %v123 = vsel %vm113, %v122, %v121
    %vm124 = vcmp.ne.s32.totalorder %v123, 0
    %vm125 = vcmp.lt.s32.totalorder %v123, 0
    %vm126 = vmand %vm125, %vm124
    %v127 = vadd.s32 %v123, 12
    %v128 = vsel %vm126, %v127, %v123
    %vm129 = vcmp.lt.s32.totalorder %v128, 6
    %vm130 = vmand %vm110, %vm129
    %v131 = vsel %vm130, 1.5707964, 0.0
    %vm132 = vcmp.ge.s32.totalorder %v91, 12
    %vm133 = vmand %vm132, %vm110
    %vm134 = vcmp.eq.s32.totalorder %v91, 25
    %vm135 = vmor %vm133, %vm134
    %v136 = vsel %vm135, 1, 0
    %v137 = vcvt.s32.f32 %v136
    %vm138 = vcmp.eq.s32.totalorder %v91, 24
    %vm139 = vmor %vm138, %vm134
    %v140 = vsel %vm139, 1, 0
    %v141 = vcvt.s32.f32 %v140
    %143 = vrot.lane.b32.xlu0 %v89, 1
    %v144 = vpop.permute.xlu0 %143
    %v146 = vsub.f32 %v89, %v144
    %148 = vset.pattern.permute.xlu0 1
    %149 = vperm.xlu0 %148, %v146
    %v150 = vpop.permute.xlu0 %149
    %v152 = vmul.f32 %v137, %v150
    %153 = vset.pattern.permute.xlu0 0
    %154 = vperm.xlu0 %153, %v89
    %v155 = vpop.permute.xlu0 %154
    %v157 = vadd.f32 %v155, %v152
    %v158 = vmul.f32 %v157, %v112
    %v159 = vadd.f32 %v158, %v131
    %v160 = vand.u32 2147483647, %v159
    %vm161 = vcmp.le.f32.partialorder %v160, 0.7853982
    %vm162 = vcmp.lt.s32.totalorder %v159, 0
    %v163 = vand.u32 %v159, 2139095040
    %v164 = vshrl.u32 %v163, 23
    %v165 = vsub.s32 %v164, 127
    %v166 = vand.u32 2147483647, %v159
    %v167 = vand.u32 %v166, 8388607
    %v168 = vor.u32 %v167, 8388608
    %v169 = vsub.s32 0, %v168
    %v170 = vadd.s32 %v165, 1
    %vm171 = vcmp.gt.s32.totalorder %v170, 0
    %v172 = vsel %vm171, %v170, 0
    %v173 = vshrl.u32 %v172, 5
    %v174 = vand.u32 %v172, 31
    %v175 = vsub.s32 32, %v174
    %v176 = vshrl.u32 683565275, %v175
    %v177 = vshll.u32 683565275, %v174
    %v178 = vshrl.u32 2475754826, %v175
    %v179 = vor.u32 %v177, %v178
    %v180 = vshll.u32 2475754826, %v174
    %v181 = vshrl.u32 2131351028, %v175
    %v182 = vor.u32 %v180, %v181
    %v183 = vshll.u32 2131351028, %v174
    %v184 = vshrl.u32 2102212464, %v175
    %v185 = vor.u32 %v183, %v184
    %v186 = vshll.u32 2102212464, %v174
    %v187 = vshrl.u32 920167782, %v175
    %v188 = vor.u32 %v186, %v187
    %v189 = vshll.u32 920167782, %v174
    %v190 = vshrl.u32 1326507024, %v175
    %v191 = vor.u32 %v189, %v190
    %vm192 = vcmp.lt.s32.totalorder %v173, 1
    %vm193 = vcmp.lt.s32.totalorder %v173, 2
    %vm194 = vcmp.lt.s32.totalorder %v173, 3
    %vm195 = vcmp.lt.s32.totalorder %v173, 4
    %v196 = vsel %vm192, %v176, %v179
    %v197 = vsel %vm195, %v185, 2102212464
    %v198 = vsel %vm194, %v182, %v197
    %v199 = vsel %vm193, %v196, %v198
    %v200 = vsel %vm192, %v179, %v182
    %v201 = vsel %vm195, %v188, 920167782
    %v202 = vsel %vm194, %v185, %v201
    %v203 = vsel %vm193, %v200, %v202
    %v204 = vsel %vm192, %v182, %v185
    %v205 = vsel %vm195, %v191, 1326507024
    %v206 = vsel %vm194, %v188, %v205
    %v207 = vsel %vm193, %v204, %v206
    %v208 = vshll.u32 %v168, 8
    %v209 = vmul.u32.u64.compose %v208, %v207
    %v210 = vextract.low.u32 %v209
    %v211 = vextract.high.u32 %v209
    %v212 = vmul.u32.u64.compose %v208, %v203
    %v213 = vextract.low.u32 %v212
    %v214 = vextract.high.u32 %v212
    %v215 = vmul.u32 %v208, %v199
    %v216 = vadd.s32 %v211, %v213
    %vm217 = vc.u32 %v211, %v213
    %v218 = vadd.s32 %v214, 1
    %v219 = vsel %vm217, %v218, %v214
    %v220 = vadd.s32 %v215, %v219
    %v221 = vadd.s32 %v220, 536870912
    %v222 = vshrl.u32 %v221, 30
    %v223 = vshll.u32 %v222, 30
    %v224 = vsub.s32 %v220, %v223
    %vm225 = vcmp.lt.s32.totalorder %v224, 0
    %v226 = vsub.s32 0, %v224
    %v227 = vsel %vm225, %v226, %v224
    %v228 = vclz %v227
    %v229 = vsub.s32 %v228, 2
    %vm230 = vcmp.gt.s32.totalorder 0, %v229
    %v231 = vsel %vm230, 0, %v229
    %v232 = vsub.s32 32, %v231
    %v233 = vshll.u32 %v224, %v231
    %v234 = vshrl.u32 %v216, %v232
    %v235 = vor.u32 %v233, %v234
    %v236 = vsub.s32 4294967266, %v231
    %v237 = vadd.s32 %v236, 127
    %v238 = vshll.u32 %v237, 23
    %v239 = vor.u32 4788187, %v238
    %v240 = vand.u32 2147483647, %v239
    %v242 = vcvt.s32.f32 %v235
    %v243 = vmul.f32 %v242, %v240
    %v244 = vxor.u32 %v243, 2147483648
    %v245 = vsel %vm162, %v244, %v243
    %v246 = vsub.s32 4, %v222
    %v247 = vsel %vm162, %v246, %v222
    %v248 = vsel %vm161, %v159, %v245
    %v249 = vsel %vm161, 0, %v247
    %v250 = vcosq.f32.pop %v248
    %v251 = vsinq.f32.pop %v248
    %vm252 = vweird.f32 %v159
    %v253 = vadd.s32 %v249, 3
    %v254 = vand.u32 %v253, 3
    %vm255 = vcmp.lt.s32.totalorder %v254, 2
    %vm256 = vcmp.eq.s32.totalorder %v254, 0
    %v257 = vxor.u32 %v251, 2147483648
    %v258 = vsel %vm256, %v250, %v257
    %vm259 = vcmp.eq.s32.totalorder %v254, 2
    %v260 = vxor.u32 %v250, 2147483648
    %v261 = vsel %vm259, %v260, %v251
    %v262 = vsel %vm255, %v258, %v261
    %v263 = vsel %vm252, nan, %v262
    %v264 = vmul.f32 %v141, %v157
    %v265 = vadd.f32 %v263, %v264
    %v266 = vpack.c.bf16 %v265, %v265
    %v267 = vld [vmem:[#allocation2] sm:$0xff]
    %v268 = vld [vmem:[#allocation2 + $0x8] sm:$0xff]
    %v269 = vld [vmem:[#allocation2 + $0x10] sm:$0xff]
    %v270 = vld [vmem:[#allocation2 + $0x18] sm:$0xff]
    %v271 = vld [vmem:[%s2] sm:$0x3]
    %v273 = vlaneseq
    %v274 = vshrl.u32 %v273, 7
    %v275 = vsub.s32 0, %v274
    %v276 = vrot.slane %v271, %v275
    %v277 = vlaneseq
    %v278 = vshrl.u32 %v277, 7
    %v279 = vsub.s32 1, %v278
    %v280 = vrot.slane %v271, %v279
    %v287 = vunpack.c.l.b16 %v267
    %v288 = vunpack.c.h.b16 %v267
    %v289 = vunpack.c.l.b16 %v268
    %v290 = vunpack.c.h.b16 %v268
    %v291 = vunpack.c.l.b16 %v269
    %v292 = vunpack.c.h.b16 %v269
    %v293 = vunpack.c.l.b16 %v270
    %v294 = vunpack.c.h.b16 %v270
    %v295 = vpack.c.b16 %v289, %v287
    %v296 = vpack.c.b16 %v290, %v288
    %v297 = vpack.c.b16 %v293, %v291
    %v298 = vpack.c.b16 %v294, %v292
    %vm303 = vcmask 261120
    %v305 = vsel %vm303, %v266, 0
    %307 = vmatprep.subr.bf16.mxu0 0
    %308 = vmatpush1.bf16.msra.mxu0 0
    %309 = vmatprep.subr.bf16.mxu0 0
    %310 = vmatpush1.bf16.msra.mxu0 0
    %311 = vmatprep.subr.bf16.mxu0 0
    %312 = vmatpush1.bf16.msra.mxu0 0
    %313 = vmatprep.subr.bf16.mxu0 0
    %314 = vmatpush1.bf16.msra.mxu0 0
    %315 = vmatprep.subr.bf16.mxu0 0
    %316 = vmatpush1.bf16.msra.mxu0 0
    %317 = vmatprep.subr.bf16.mxu0 0
    %318 = vmatpush1.bf16.msra.mxu0 0
    %319 = vmatprep.subr.bf16.mxu0 %v298
    %320 = vmatpush1.bf16.msra.mxu0 %v297
    %321 = vmatprep.subr.bf16.mxu0 %v296
    %322 = vmatpush1.bf16.msra.mxu0 %v295
    %323 = vmatprep.subr.bf16.mxu0 0
    %324 = vmatpush2.bf16.msra.mxu0 0
    %325 = vmatprep.subr.bf16.mxu0 0
    %326 = vmatpush2.bf16.msra.mxu0 0
    %327 = vmatprep.subr.bf16.mxu0 0
    %328 = vmatpush2.bf16.msra.mxu0 0
    %329 = vmatprep.subr.bf16.mxu0 0
    %330 = vmatpush2.bf16.msra.mxu0 0
    %331 = vmatprep.subr.bf16.mxu0 0
    %332 = vmatpush2.bf16.msra.mxu0 0
    %333 = vmatprep.subr.bf16.mxu0 0
    %334 = vmatpush2.bf16.msra.mxu0 0
    %335 = vmatprep.subr.bf16.mxu0 0
    %336 = vmatpush2.bf16.msra.mxu0 0
    %337 = vmatprep.subr.bf16.mxu0 0
    %338 = vmatpush2.bf16.msra.mxu0 0
    %339 = vmatprep.mubr.bf16.mxu0 0
    %340 = vmatmul.mubr.bf16.gmra.mxu0 %v305
    %v341 = vpop.f32.mrf.mxu0
    %v342 = vadd.f32 %v276, %v341
    %v343 = vpop.f32.mrf.mxu0
    %v344 = vadd.f32 %v280, %v343
    %v345 = vpop.f32.mrf.mxu0
    %v346 = vpop.f32.mrf.mxu0
    %347 = vdwg.mxu0
    %v348 = vmax.f32 %v342, 0.0
    %v349 = vmax.f32 %v344, 0.0
    %v350 = vpack.c.bf16 %v348, %v348
    %v351 = vpack.c.bf16 %v349, %v349
    %v352 = vld [vmem:[#allocation5] sm:$0xff]
    %v353 = vld [vmem:[#allocation5 + $0x8] sm:$0xff]
    %v354 = vld [vmem:[#allocation5 + $0x10] sm:$0xff]
    %v355 = vld [vmem:[#allocation5 + $0x18] sm:$0xff]
    %v356 = vld [vmem:[#allocation5 + $0x20] sm:$0xff]
    %v357 = vld [vmem:[#allocation5 + $0x28] sm:$0xff]
    %v358 = vld [vmem:[#allocation5 + $0x30] sm:$0xff]
    %v359 = vld [vmem:[#allocation5 + $0x38] sm:$0xff]
    %v360 = vld [vmem:[#allocation5 + $0x40] sm:$0xff]
    %v361 = vld [vmem:[#allocation5 + $0x48] sm:$0xff]
    %v362 = vld [vmem:[#allocation5 + $0x50] sm:$0xff]
    %v363 = vld [vmem:[#allocation5 + $0x58] sm:$0xff]
    %v364 = vld [vmem:[#allocation5 + $0x60] sm:$0xff]
    %v365 = vld [vmem:[#allocation5 + $0x68] sm:$0xff]
    %v366 = vld [vmem:[#allocation5 + $0x70] sm:$0xff]
    %v367 = vld [vmem:[#allocation5 + $0x78] sm:$0xff]
    %v368 = vld [vmem:[#allocation5 + $0x80] sm:$0xff]
    %v369 = vld [vmem:[#allocation5 + $0x88] sm:$0xff]
    %v370 = vld [vmem:[#allocation5 + $0x90] sm:$0xff]
    %v371 = vld [vmem:[#allocation5 + $0x98] sm:$0xff]
    %v372 = vld [vmem:[#allocation5 + $0xa0] sm:$0xff]
    %v373 = vld [vmem:[#allocation5 + $0xa8] sm:$0xff]
    %v374 = vld [vmem:[#allocation5 + $0xb0] sm:$0xff]
    %v375 = vld [vmem:[#allocation5 + $0xb8] sm:$0xff]
    %v376 = vld [vmem:[#allocation5 + $0xc0] sm:$0xff]
    %v377 = vld [vmem:[#allocation5 + $0xc8] sm:$0xff]
    %v378 = vld [vmem:[#allocation5 + $0xd0] sm:$0xff]
    %v379 = vld [vmem:[#allocation5 + $0xd8] sm:$0xff]
    %v380 = vld [vmem:[#allocation5 + $0xe0] sm:$0xff]
    %v381 = vld [vmem:[#allocation5 + $0xe8] sm:$0xff]
    %v382 = vld [vmem:[#allocation5 + $0xf0] sm:$0xff]
    %v383 = vld [vmem:[#allocation5 + $0xf8] sm:$0xff]
    %v384 = vld [vmem:[#allocation5 + $0x100] sm:$0xff]
    %v385 = vld [vmem:[#allocation5 + $0x108] sm:$0xff]
    %v386 = vld [vmem:[#allocation5 + $0x110] sm:$0xff]
    %v387 = vld [vmem:[#allocation5 + $0x118] sm:$0xff]
    %v388 = vld [vmem:[#allocation5 + $0x120] sm:$0xff]
    %v389 = vld [vmem:[#allocation5 + $0x128] sm:$0xff]
    %v390 = vld [vmem:[#allocation5 + $0x130] sm:$0xff]
    %v391 = vld [vmem:[#allocation5 + $0x138] sm:$0xff]
    %v392 = vld [vmem:[#allocation5 + $0x140] sm:$0xff]
    %v393 = vld [vmem:[#allocation5 + $0x148] sm:$0xff]
    %v394 = vld [vmem:[#allocation5 + $0x150] sm:$0xff]
    %v395 = vld [vmem:[#allocation5 + $0x158] sm:$0xff]
    %v396 = vld [vmem:[#allocation5 + $0x160] sm:$0xff]
    %v397 = vld [vmem:[#allocation5 + $0x168] sm:$0xff]
    %v398 = vld [vmem:[#allocation5 + $0x170] sm:$0xff]
    %v399 = vld [vmem:[#allocation5 + $0x178] sm:$0xff]
    %v400 = vld [vmem:[#allocation5 + $0x180] sm:$0xff]
    %v401 = vld [vmem:[#allocation5 + $0x188] sm:$0xff]
    %v402 = vld [vmem:[#allocation5 + $0x190] sm:$0xff]
    %v403 = vld [vmem:[#allocation5 + $0x198] sm:$0xff]
    %v404 = vld [vmem:[#allocation5 + $0x1a0] sm:$0xff]
    %v405 = vld [vmem:[#allocation5 + $0x1a8] sm:$0xff]
    %v406 = vld [vmem:[#allocation5 + $0x1b0] sm:$0xff]
    %v407 = vld [vmem:[#allocation5 + $0x1b8] sm:$0xff]
    %v408 = vld [vmem:[#allocation5 + $0x1c0] sm:$0xff]
    %v409 = vld [vmem:[#allocation5 + $0x1c8] sm:$0xff]
    %v410 = vld [vmem:[#allocation5 + $0x1d0] sm:$0xff]
    %v411 = vld [vmem:[#allocation5 + $0x1d8] sm:$0xff]
    %v412 = vld [vmem:[#allocation5 + $0x1e0] sm:$0xff]
    %v413 = vld [vmem:[#allocation5 + $0x1e8] sm:$0xff]
    %v414 = vld [vmem:[#allocation5 + $0x1f0] sm:$0xff]
    %v415 = vld [vmem:[#allocation5 + $0x1f8] sm:$0xff]
    %v416 = vld [vmem:[%s4] sm:$0xf]
    %v418 = vlaneseq
    %v419 = vshrl.u32 %v418, 7
    %v420 = vsub.s32 0, %v419
    %v421 = vrot.slane %v416, %v420
    %v422 = vlaneseq
    %v423 = vshrl.u32 %v422, 7
    %v424 = vsub.s32 1, %v423
    %v425 = vrot.slane %v416, %v424
    %v426 = vlaneseq
    %v427 = vshrl.u32 %v426, 7
    %v428 = vsub.s32 2, %v427
    %v429 = vrot.slane %v416, %v428
    %v430 = vlaneseq
    %v431 = vshrl.u32 %v430, 7
    %v432 = vsub.s32 3, %v431
    %v433 = vrot.slane %v416, %v432
    %v502 = vunpack.c.l.b16 %v352
    %v503 = vunpack.c.h.b16 %v352
    %v504 = vunpack.c.l.b16 %v353
    %v505 = vunpack.c.h.b16 %v353
    %v506 = vunpack.c.l.b16 %v354
    %v507 = vunpack.c.h.b16 %v354
    %v508 = vunpack.c.l.b16 %v355
    %v509 = vunpack.c.h.b16 %v355
    %v510 = vunpack.c.l.b16 %v356
    %v511 = vunpack.c.h.b16 %v356
    %v512 = vunpack.c.l.b16 %v357
    %v513 = vunpack.c.h.b16 %v357
    %v514 = vunpack.c.l.b16 %v358
    %v515 = vunpack.c.h.b16 %v358
    %v516 = vunpack.c.l.b16 %v359
    %v517 = vunpack.c.h.b16 %v359
    %v518 = vunpack.c.l.b16 %v360
    %v519 = vunpack.c.h.b16 %v360
    %v520 = vunpack.c.l.b16 %v361
    %v521 = vunpack.c.h.b16 %v361
    %v522 = vunpack.c.l.b16 %v362
    %v523 = vunpack.c.h.b16 %v362
    %v524 = vunpack.c.l.b16 %v363
    %v525 = vunpack.c.h.b16 %v363
    %v526 = vunpack.c.l.b16 %v364
    %v527 = vunpack.c.h.b16 %v364
    %v528 = vunpack.c.l.b16 %v365
    %v529 = vunpack.c.h.b16 %v365
    %v530 = vunpack.c.l.b16 %v366
    %v531 = vunpack.c.h.b16 %v366
    %v532 = vunpack.c.l.b16 %v367
    %v533 = vunpack.c.h.b16 %v367
    %v534 = vunpack.c.l.b16 %v368
    %v535 = vunpack.c.h.b16 %v368
    %v536 = vunpack.c.l.b16 %v369
    %v537 = vunpack.c.h.b16 %v369
    %v538 = vunpack.c.l.b16 %v370
    %v539 = vunpack.c.h.b16 %v370
    %v540 = vunpack.c.l.b16 %v371
    %v541 = vunpack.c.h.b16 %v371
    %v542 = vunpack.c.l.b16 %v372
    %v543 = vunpack.c.h.b16 %v372
    %v544 = vunpack.c.l.b16 %v373
    %v545 = vunpack.c.h.b16 %v373
    %v546 = vunpack.c.l.b16 %v374
    %v547 = vunpack.c.h.b16 %v374
    %v548 = vunpack.c.l.b16 %v375
    %v549 = vunpack.c.h.b16 %v375
    %v550 = vunpack.c.l.b16 %v376
    %v551 = vunpack.c.h.b16 %v376
    %v552 = vunpack.c.l.b16 %v377
    %v553 = vunpack.c.h.b16 %v377
    %v554 = vunpack.c.l.b16 %v378
    %v555 = vunpack.c.h.b16 %v378
    %v556 = vunpack.c.l.b16 %v379
    %v557 = vunpack.c.h.b16 %v379
    %v558 = vunpack.c.l.b16 %v380
    %v559 = vunpack.c.h.b16 %v380
    %v560 = vunpack.c.l.b16 %v381
    %v561 = vunpack.c.h.b16 %v381
    %v562 = vunpack.c.l.b16 %v382
    %v563 = vunpack.c.h.b16 %v382
    %v564 = vunpack.c.l.b16 %v383
    %v565 = vunpack.c.h.b16 %v383
    %v566 = vunpack.c.l.b16 %v384
    %v567 = vunpack.c.h.b16 %v384
    %v568 = vunpack.c.l.b16 %v385
    %v569 = vunpack.c.h.b16 %v385
    %v570 = vunpack.c.l.b16 %v386
    %v571 = vunpack.c.h.b16 %v386
    %v572 = vunpack.c.l.b16 %v387
    %v573 = vunpack.c.h.b16 %v387
    %v574 = vunpack.c.l.b16 %v388
    %v575 = vunpack.c.h.b16 %v388
    %v576 = vunpack.c.l.b16 %v389
    %v577 = vunpack.c.h.b16 %v389
    %v578 = vunpack.c.l.b16 %v390
    %v579 = vunpack.c.h.b16 %v390
    %v580 = vunpack.c.l.b16 %v391
    %v581 = vunpack.c.h.b16 %v391
    %v582 = vunpack.c.l.b16 %v392
    %v583 = vunpack.c.h.b16 %v392
    %v584 = vunpack.c.l.b16 %v393
    %v585 = vunpack.c.h.b16 %v393
    %v586 = vunpack.c.l.b16 %v394
    %v587 = vunpack.c.h.b16 %v394
    %v588 = vunpack.c.l.b16 %v395
    %v589 = vunpack.c.h.b16 %v395
    %v590 = vunpack.c.l.b16 %v396
    %v591 = vunpack.c.h.b16 %v396
    %v592 = vunpack.c.l.b16 %v397
    %v593 = vunpack.c.h.b16 %v397
    %v594 = vunpack.c.l.b16 %v398
    %v595 = vunpack.c.h.b16 %v398
    %v596 = vunpack.c.l.b16 %v399
    %v597 = vunpack.c.h.b16 %v399
    %v598 = vunpack.c.l.b16 %v400
    %v599 = vunpack.c.h.b16 %v400
    %v600 = vunpack.c.l.b16 %v401
    %v601 = vunpack.c.h.b16 %v401
    %v602 = vunpack.c.l.b16 %v402
    %v603 = vunpack.c.h.b16 %v402
    %v604 = vunpack.c.l.b16 %v403
    %v605 = vunpack.c.h.b16 %v403
    %v606 = vunpack.c.l.b16 %v404
    %v607 = vunpack.c.h.b16 %v404
    %v608 = vunpack.c.l.b16 %v405
    %v609 = vunpack.c.h.b16 %v405
    %v610 = vunpack.c.l.b16 %v406
    %v611 = vunpack.c.h.b16 %v406
    %v612 = vunpack.c.l.b16 %v407
    %v613 = vunpack.c.h.b16 %v407
    %v614 = vunpack.c.l.b16 %v408
    %v615 = vunpack.c.h.b16 %v408
    %v616 = vunpack.c.l.b16 %v409
    %v617 = vunpack.c.h.b16 %v409
    %v618 = vunpack.c.l.b16 %v410
    %v619 = vunpack.c.h.b16 %v410
    %v620 = vunpack.c.l.b16 %v411
    %v621 = vunpack.c.h.b16 %v411
    %v622 = vunpack.c.l.b16 %v412
    %v623 = vunpack.c.h.b16 %v412
    %v624 = vunpack.c.l.b16 %v413
    %v625 = vunpack.c.h.b16 %v413
    %v626 = vunpack.c.l.b16 %v414
    %v627 = vunpack.c.h.b16 %v414
    %v628 = vunpack.c.l.b16 %v415
    %v629 = vunpack.c.h.b16 %v415
    %v630 = vpack.c.b16 %v506, %v502
    %v631 = vpack.c.b16 %v507, %v503
    %v632 = vpack.c.b16 %v508, %v504
    %v633 = vpack.c.b16 %v509, %v505
    %v634 = vpack.c.b16 %v514, %v510
    %v635 = vpack.c.b16 %v515, %v511
    %v636 = vpack.c.b16 %v516, %v512
    %v637 = vpack.c.b16 %v517, %v513
    %v638 = vpack.c.b16 %v522, %v518
    %v639 = vpack.c.b16 %v523, %v519
    %v640 = vpack.c.b16 %v524, %v520
    %v641 = vpack.c.b16 %v525, %v521
    %v642 = vpack.c.b16 %v530, %v526
    %v643 = vpack.c.b16 %v531, %v527
    %v644 = vpack.c.b16 %v532, %v528
    %v645 = vpack.c.b16 %v533, %v529
    %v646 = vpack.c.b16 %v538, %v534
    %v647 = vpack.c.b16 %v539, %v535
    %v648 = vpack.c.b16 %v540, %v536
    %v649 = vpack.c.b16 %v541, %v537
    %v650 = vpack.c.b16 %v546, %v542
    %v651 = vpack.c.b16 %v547, %v543
    %v652 = vpack.c.b16 %v548, %v544
    %v653 = vpack.c.b16 %v549, %v545
    %v654 = vpack.c.b16 %v554, %v550
    %v655 = vpack.c.b16 %v555, %v551
    %v656 = vpack.c.b16 %v556, %v552
    %v657 = vpack.c.b16 %v557, %v553
    %v658 = vpack.c.b16 %v562, %v558
    %v659 = vpack.c.b16 %v563, %v559
    %v660 = vpack.c.b16 %v564, %v560
    %v661 = vpack.c.b16 %v565, %v561
    %v662 = vpack.c.b16 %v570, %v566
    %v663 = vpack.c.b16 %v571, %v567
    %v664 = vpack.c.b16 %v572, %v568
    %v665 = vpack.c.b16 %v573, %v569
    %v666 = vpack.c.b16 %v578, %v574
    %v667 = vpack.c.b16 %v579, %v575
    %v668 = vpack.c.b16 %v580, %v576
    %v669 = vpack.c.b16 %v581, %v577
    %v670 = vpack.c.b16 %v586, %v582
    %v671 = vpack.c.b16 %v587, %v583
    %v672 = vpack.c.b16 %v588, %v584
    %v673 = vpack.c.b16 %v589, %v585
    %v674 = vpack.c.b16 %v594, %v590
    %v675 = vpack.c.b16 %v595, %v591
    %v676 = vpack.c.b16 %v596, %v592
    %v677 = vpack.c.b16 %v597, %v593
    %v678 = vpack.c.b16 %v602, %v598
    %v679 = vpack.c.b16 %v603, %v599
    %v680 = vpack.c.b16 %v604, %v600
    %v681 = vpack.c.b16 %v605, %v601
    %v682 = vpack.c.b16 %v610, %v606
    %v683 = vpack.c.b16 %v611, %v607
    %v684 = vpack.c.b16 %v612, %v608
    %v685 = vpack.c.b16 %v613, %v609
    %v686 = vpack.c.b16 %v618, %v614
    %v687 = vpack.c.b16 %v619, %v615
    %v688 = vpack.c.b16 %v620, %v616
    %v689 = vpack.c.b16 %v621, %v617
    %v690 = vpack.c.b16 %v626, %v622
    %v691 = vpack.c.b16 %v627, %v623
    %v692 = vpack.c.b16 %v628, %v624
    %v693 = vpack.c.b16 %v629, %v625
    %758 = vmatprep.subr.bf16.mxu0 %v659
    %759 = vmatpush1.bf16.msra.mxu0 %v658
    %760 = vmatprep.subr.bf16.mxu0 %v655
    %761 = vmatpush1.bf16.msra.mxu0 %v654
    %762 = vmatprep.subr.bf16.mxu0 %v651
    %763 = vmatpush1.bf16.msra.mxu0 %v650
    %764 = vmatprep.subr.bf16.mxu0 %v647
    %765 = vmatpush1.bf16.msra.mxu0 %v646
    %766 = vmatprep.subr.bf16.mxu0 %v643
    %767 = vmatpush1.bf16.msra.mxu0 %v642
    %768 = vmatprep.subr.bf16.mxu0 %v639
    %769 = vmatpush1.bf16.msra.mxu0 %v638
    %770 = vmatprep.subr.bf16.mxu0 %v635
    %771 = vmatpush1.bf16.msra.mxu0 %v634
    %772 = vmatprep.subr.bf16.mxu0 %v631
    %773 = vmatpush1.bf16.msra.mxu0 %v630
    %774 = vmatprep.subr.bf16.mxu0 %v691
    %775 = vmatpush2.bf16.msra.mxu0 %v690
    %776 = vmatprep.subr.bf16.mxu0 %v687
    %777 = vmatpush2.bf16.msra.mxu0 %v686
    %778 = vmatprep.subr.bf16.mxu0 %v683
    %779 = vmatpush2.bf16.msra.mxu0 %v682
    %780 = vmatprep.subr.bf16.mxu0 %v679
    %781 = vmatpush2.bf16.msra.mxu0 %v678
    %782 = vmatprep.subr.bf16.mxu0 %v675
    %783 = vmatpush2.bf16.msra.mxu0 %v674
    %784 = vmatprep.subr.bf16.mxu0 %v671
    %785 = vmatpush2.bf16.msra.mxu0 %v670
    %786 = vmatprep.subr.bf16.mxu0 %v667
    %787 = vmatpush2.bf16.msra.mxu0 %v666
    %788 = vmatprep.subr.bf16.mxu0 %v663
    %789 = vmatpush2.bf16.msra.mxu0 %v662
    %790 = vmatprep.mubr.bf16.mxu0 %v351
    %791 = vmatmul.mubr.bf16.gmra.mxu0 %v350
    %v792 = vpop.f32.mrf.mxu0
    %v793 = vadd.f32 %v421, %v792
    %v794 = vpop.f32.mrf.mxu0
    %v795 = vadd.f32 %v425, %v794
    %v796 = vpop.f32.mrf.mxu0
    %v797 = vpop.f32.mrf.mxu0
    %798 = vdwg.mxu0
    %799 = vmatprep.subr.bf16.mxu0 %v661
    %800 = vmatpush1.bf16.msra.mxu0 %v660
    %801 = vmatprep.subr.bf16.mxu0 %v657
    %802 = vmatpush1.bf16.msra.mxu0 %v656
    %803 = vmatprep.subr.bf16.mxu0 %v653
    %804 = vmatpush1.bf16.msra.mxu0 %v652
    %805 = vmatprep.subr.bf16.mxu0 %v649
    %806 = vmatpush1.bf16.msra.mxu0 %v648
    %807 = vmatprep.subr.bf16.mxu0 %v645
    %808 = vmatpush1.bf16.msra.mxu0 %v644
    %809 = vmatprep.subr.bf16.mxu0 %v641
    %810 = vmatpush1.bf16.msra.mxu0 %v640
    %811 = vmatprep.subr.bf16.mxu0 %v637
    %812 = vmatpush1.bf16.msra.mxu0 %v636
    %813 = vmatprep.subr.bf16.mxu0 %v633
    %814 = vmatpush1.bf16.msra.mxu0 %v632
    %815 = vmatprep.subr.bf16.mxu0 %v693
    %816 = vmatpush2.bf16.msra.mxu0 %v692
    %817 = vmatprep.subr.bf16.mxu0 %v689
    %818 = vmatpush2.bf16.msra.mxu0 %v688
    %819 = vmatprep.subr.bf16.mxu0 %v685
    %820 = vmatpush2.bf16.msra.mxu0 %v684
    %821 = vmatprep.subr.bf16.mxu0 %v681
    %822 = vmatpush2.bf16.msra.mxu0 %v680
    %823 = vmatprep.subr.bf16.mxu0 %v677
    %824 = vmatpush2.bf16.msra.mxu0 %v676
    %825 = vmatprep.subr.bf16.mxu0 %v673
    %826 = vmatpush2.bf16.msra.mxu0 %v672
    %827 = vmatprep.subr.bf16.mxu0 %v669
    %828 = vmatpush2.bf16.msra.mxu0 %v668
    %829 = vmatprep.subr.bf16.mxu0 %v665
    %830 = vmatpush2.bf16.msra.mxu0 %v664
    %831 = vmatprep.mubr.bf16.mxu0 %v351
    %832 = vmatmul.mubr.bf16.gmra.mxu0 %v350
    %v833 = vpop.f32.mrf.mxu0
    %v834 = vadd.f32 %v429, %v833
    %v835 = vpop.f32.mrf.mxu0
    %v836 = vadd.f32 %v433, %v835
    %v837 = vpop.f32.mrf.mxu0
    %v838 = vpop.f32.mrf.mxu0
    %839 = vdwg.mxu0
    %v840 = vmax.f32 %v793, 0.0
    %v841 = vmax.f32 %v795, 0.0
    %v842 = vmax.f32 %v834, 0.0
    %v843 = vmax.f32 %v836, 0.0
    %v844 = vpack.c.bf16 %v840, %v840
    %v845 = vpack.c.bf16 %v841, %v841
    %v846 = vpack.c.bf16 %v842, %v842
    %v847 = vpack.c.bf16 %v843, %v843
    %v848 = vld [vmem:[#allocation7] sm:$0xff]
    %v849 = vld [vmem:[#allocation7 + $0x8] sm:$0xff]
    %v850 = vld [vmem:[#allocation7 + $0x10] sm:$0xff]
    %v851 = vld [vmem:[#allocation7 + $0x18] sm:$0xff]
    %v852 = vld [vmem:[#allocation7 + $0x20] sm:$0xff]
    %v853 = vld [vmem:[#allocation7 + $0x28] sm:$0xff]
    %v854 = vld [vmem:[#allocation7 + $0x30] sm:$0xff]
    %v855 = vld [vmem:[#allocation7 + $0x38] sm:$0xff]
    %v856 = vld [vmem:[#allocation7 + $0x40] sm:$0xff]
    %v857 = vld [vmem:[#allocation7 + $0x48] sm:$0xff]
    %v858 = vld [vmem:[#allocation7 + $0x50] sm:$0xff]
    %v859 = vld [vmem:[#allocation7 + $0x58] sm:$0xff]
    %v860 = vld [vmem:[#allocation7 + $0x60] sm:$0xff]
    %v861 = vld [vmem:[#allocation7 + $0x68] sm:$0xff]
    %v862 = vld [vmem:[#allocation7 + $0x70] sm:$0xff]
    %v863 = vld [vmem:[#allocation7 + $0x78] sm:$0xff]
    %v864 = vld [vmem:[#allocation7 + $0x80] sm:$0xff]
    %v865 = vld [vmem:[#allocation7 + $0x88] sm:$0xff]
    %v866 = vld [vmem:[#allocation7 + $0x90] sm:$0xff]
    %v867 = vld [vmem:[#allocation7 + $0x98] sm:$0xff]
    %v868 = vld [vmem:[#allocation7 + $0xa0] sm:$0xff]
    %v869 = vld [vmem:[#allocation7 + $0xa8] sm:$0xff]
    %v870 = vld [vmem:[#allocation7 + $0xb0] sm:$0xff]
    %v871 = vld [vmem:[#allocation7 + $0xb8] sm:$0xff]
    %v872 = vld [vmem:[#allocation7 + $0xc0] sm:$0xff]
    %v873 = vld [vmem:[#allocation7 + $0xc8] sm:$0xff]
    %v874 = vld [vmem:[#allocation7 + $0xd0] sm:$0xff]
    %v875 = vld [vmem:[#allocation7 + $0xd8] sm:$0xff]
    %v876 = vld [vmem:[#allocation7 + $0xe0] sm:$0xff]
    %v877 = vld [vmem:[#allocation7 + $0xe8] sm:$0xff]
    %v878 = vld [vmem:[#allocation7 + $0xf0] sm:$0xff]
    %v879 = vld [vmem:[#allocation7 + $0xf8] sm:$0xff]
    %v880 = vld [vmem:[#allocation7 + $0x100] sm:$0xff]
    %v881 = vld [vmem:[#allocation7 + $0x108] sm:$0xff]
    %v882 = vld [vmem:[#allocation7 + $0x110] sm:$0xff]
    %v883 = vld [vmem:[#allocation7 + $0x118] sm:$0xff]
    %v884 = vld [vmem:[#allocation7 + $0x120] sm:$0xff]
    %v885 = vld [vmem:[#allocation7 + $0x128] sm:$0xff]
    %v886 = vld [vmem:[#allocation7 + $0x130] sm:$0xff]
    %v887 = vld [vmem:[#allocation7 + $0x138] sm:$0xff]
    %v888 = vld [vmem:[#allocation7 + $0x140] sm:$0xff]
    %v889 = vld [vmem:[#allocation7 + $0x148] sm:$0xff]
    %v890 = vld [vmem:[#allocation7 + $0x150] sm:$0xff]
    %v891 = vld [vmem:[#allocation7 + $0x158] sm:$0xff]
    %v892 = vld [vmem:[#allocation7 + $0x160] sm:$0xff]
    %v893 = vld [vmem:[#allocation7 + $0x168] sm:$0xff]
    %v894 = vld [vmem:[#allocation7 + $0x170] sm:$0xff]
    %v895 = vld [vmem:[#allocation7 + $0x178] sm:$0xff]
    %v896 = vld [vmem:[#allocation7 + $0x180] sm:$0xff]
    %v897 = vld [vmem:[#allocation7 + $0x188] sm:$0xff]
    %v898 = vld [vmem:[#allocation7 + $0x190] sm:$0xff]
    %v899 = vld [vmem:[#allocation7 + $0x198] sm:$0xff]
    %v900 = vld [vmem:[#allocation7 + $0x1a0] sm:$0xff]
    %v901 = vld [vmem:[#allocation7 + $0x1a8] sm:$0xff]
    %v902 = vld [vmem:[#allocation7 + $0x1b0] sm:$0xff]
    %v903 = vld [vmem:[#allocation7 + $0x1b8] sm:$0xff]
    %v904 = vld [vmem:[#allocation7 + $0x1c0] sm:$0xff]
    %v905 = vld [vmem:[#allocation7 + $0x1c8] sm:$0xff]
    %v906 = vld [vmem:[#allocation7 + $0x1d0] sm:$0xff]
    %v907 = vld [vmem:[#allocation7 + $0x1d8] sm:$0xff]
    %v908 = vld [vmem:[#allocation7 + $0x1e0] sm:$0xff]
    %v909 = vld [vmem:[#allocation7 + $0x1e8] sm:$0xff]
    %v910 = vld [vmem:[#allocation7 + $0x1f0] sm:$0xff]
    %v911 = vld [vmem:[#allocation7 + $0x1f8] sm:$0xff]
    %v912 = vld [vmem:[%s6] sm:$0x3]
    %v914 = vlaneseq
    %v915 = vshrl.u32 %v914, 7
    %v916 = vsub.s32 0, %v915
    %v917 = vrot.slane %v912, %v916
    %v918 = vlaneseq
    %v919 = vshrl.u32 %v918, 7
    %v920 = vsub.s32 1, %v919
    %v921 = vrot.slane %v912, %v920
    %v988 = vunpack.c.l.b16 %v848
    %v989 = vunpack.c.h.b16 %v848
    %v990 = vunpack.c.l.b16 %v849
    %v991 = vunpack.c.h.b16 %v849
    %v992 = vunpack.c.l.b16 %v850
    %v993 = vunpack.c.h.b16 %v850
    %v994 = vunpack.c.l.b16 %v851
    %v995 = vunpack.c.h.b16 %v851
    %v996 = vunpack.c.l.b16 %v852
    %v997 = vunpack.c.h.b16 %v852
    %v998 = vunpack.c.l.b16 %v853
    %v999 = vunpack.c.h.b16 %v853
    %v1000 = vunpack.c.l.b16 %v854
    %v1001 = vunpack.c.h.b16 %v854
    %v1002 = vunpack.c.l.b16 %v855
    %v1003 = vunpack.c.h.b16 %v855
    %v1004 = vunpack.c.l.b16 %v856
    %v1005 = vunpack.c.h.b16 %v856
    %v1006 = vunpack.c.l.b16 %v857
    %v1007 = vunpack.c.h.b16 %v857
    %v1008 = vunpack.c.l.b16 %v858
    %v1009 = vunpack.c.h.b16 %v858
    %v1010 = vunpack.c.l.b16 %v859
    %v1011 = vunpack.c.h.b16 %v859
    %v1012 = vunpack.c.l.b16 %v860
    %v1013 = vunpack.c.h.b16 %v860
    %v1014 = vunpack.c.l.b16 %v861
    %v1015 = vunpack.c.h.b16 %v861
    %v1016 = vunpack.c.l.b16 %v862
    %v1017 = vunpack.c.h.b16 %v862
    %v1018 = vunpack.c.l.b16 %v863
    %v1019 = vunpack.c.h.b16 %v863
    %v1020 = vunpack.c.l.b16 %v864
    %v1021 = vunpack.c.h.b16 %v864
    %v1022 = vunpack.c.l.b16 %v865
    %v1023 = vunpack.c.h.b16 %v865
    %v1024 = vunpack.c.l.b16 %v866
    %v1025 = vunpack.c.h.b16 %v866
    %v1026 = vunpack.c.l.b16 %v867
    %v1027 = vunpack.c.h.b16 %v867
    %v1028 = vunpack.c.l.b16 %v868
    %v1029 = vunpack.c.h.b16 %v868
    %v1030 = vunpack.c.l.b16 %v869
    %v1031 = vunpack.c.h.b16 %v869
    %v1032 = vunpack.c.l.b16 %v870
    %v1033 = vunpack.c.h.b16 %v870
    %v1034 = vunpack.c.l.b16 %v871
    %v1035 = vunpack.c.h.b16 %v871
    %v1036 = vunpack.c.l.b16 %v872
    %v1037 = vunpack.c.h.b16 %v872
    %v1038 = vunpack.c.l.b16 %v873
    %v1039 = vunpack.c.h.b16 %v873
    %v1040 = vunpack.c.l.b16 %v874
    %v1041 = vunpack.c.h.b16 %v874
    %v1042 = vunpack.c.l.b16 %v875
    %v1043 = vunpack.c.h.b16 %v875
    %v1044 = vunpack.c.l.b16 %v876
    %v1045 = vunpack.c.h.b16 %v876
    %v1046 = vunpack.c.l.b16 %v877
    %v1047 = vunpack.c.h.b16 %v877
    %v1048 = vunpack.c.l.b16 %v878
    %v1049 = vunpack.c.h.b16 %v878
    %v1050 = vunpack.c.l.b16 %v879
    %v1051 = vunpack.c.h.b16 %v879
    %v1052 = vunpack.c.l.b16 %v880
    %v1053 = vunpack.c.h.b16 %v880
    %v1054 = vunpack.c.l.b16 %v881
    %v1055 = vunpack.c.h.b16 %v881
    %v1056 = vunpack.c.l.b16 %v882
    %v1057 = vunpack.c.h.b16 %v882
    %v1058 = vunpack.c.l.b16 %v883
    %v1059 = vunpack.c.h.b16 %v883
    %v1060 = vunpack.c.l.b16 %v884
    %v1061 = vunpack.c.h.b16 %v884
    %v1062 = vunpack.c.l.b16 %v885
    %v1063 = vunpack.c.h.b16 %v885
    %v1064 = vunpack.c.l.b16 %v886
    %v1065 = vunpack.c.h.b16 %v886
    %v1066 = vunpack.c.l.b16 %v887
    %v1067 = vunpack.c.h.b16 %v887
    %v1068 = vunpack.c.l.b16 %v888
    %v1069 = vunpack.c.h.b16 %v888
    %v1070 = vunpack.c.l.b16 %v889
    %v1071 = vunpack.c.h.b16 %v889
    %v1072 = vunpack.c.l.b16 %v890
    %v1073 = vunpack.c.h.b16 %v890
    %v1074 = vunpack.c.l.b16 %v891
    %v1075 = vunpack.c.h.b16 %v891
    %v1076 = vunpack.c.l.b16 %v892
    %v1077 = vunpack.c.h.b16 %v892
    %v1078 = vunpack.c.l.b16 %v893
    %v1079 = vunpack.c.h.b16 %v893
    %v1080 = vunpack.c.l.b16 %v894
    %v1081 = vunpack.c.h.b16 %v894
    %v1082 = vunpack.c.l.b16 %v895
    %v1083 = vunpack.c.h.b16 %v895
    %v1084 = vunpack.c.l.b16 %v896
    %v1085 = vunpack.c.h.b16 %v896
    %v1086 = vunpack.c.l.b16 %v897
    %v1087 = vunpack.c.h.b16 %v897
    %v1088 = vunpack.c.l.b16 %v898
    %v1089 = vunpack.c.h.b16 %v898
    %v1090 = vunpack.c.l.b16 %v899
    %v1091 = vunpack.c.h.b16 %v899
    %v1092 = vunpack.c.l.b16 %v900
    %v1093 = vunpack.c.h.b16 %v900
    %v1094 = vunpack.c.l.b16 %v901
    %v1095 = vunpack.c.h.b16 %v901
    %v1096 = vunpack.c.l.b16 %v902
    %v1097 = vunpack.c.h.b16 %v902
    %v1098 = vunpack.c.l.b16 %v903
    %v1099 = vunpack.c.h.b16 %v903
    %v1100 = vunpack.c.l.b16 %v904
    %v1101 = vunpack.c.h.b16 %v904
    %v1102 = vunpack.c.l.b16 %v905
    %v1103 = vunpack.c.h.b16 %v905
    %v1104 = vunpack.c.l.b16 %v906
    %v1105 = vunpack.c.h.b16 %v906
    %v1106 = vunpack.c.l.b16 %v907
    %v1107 = vunpack.c.h.b16 %v907
    %v1108 = vunpack.c.l.b16 %v908
    %v1109 = vunpack.c.h.b16 %v908
    %v1110 = vunpack.c.l.b16 %v909
    %v1111 = vunpack.c.h.b16 %v909
    %v1112 = vunpack.c.l.b16 %v910
    %v1113 = vunpack.c.h.b16 %v910
    %v1114 = vunpack.c.l.b16 %v911
    %v1115 = vunpack.c.h.b16 %v911
    %v1116 = vpack.c.b16 %v990, %v988
    %v1117 = vpack.c.b16 %v991, %v989
    %v1118 = vpack.c.b16 %v994, %v992
    %v1119 = vpack.c.b16 %v995, %v993
    %v1120 = vpack.c.b16 %v998, %v996
    %v1121 = vpack.c.b16 %v999, %v997
    %v1122 = vpack.c.b16 %v1002, %v1000
    %v1123 = vpack.c.b16 %v1003, %v1001
    %v1124 = vpack.c.b16 %v1006, %v1004
    %v1125 = vpack.c.b16 %v1007, %v1005
    %v1126 = vpack.c.b16 %v1010, %v1008
    %v1127 = vpack.c.b16 %v1011, %v1009
    %v1128 = vpack.c.b16 %v1014, %v1012
    %v1129 = vpack.c.b16 %v1015, %v1013
    %v1130 = vpack.c.b16 %v1018, %v1016
    %v1131 = vpack.c.b16 %v1019, %v1017
    %v1132 = vpack.c.b16 %v1022, %v1020
    %v1133 = vpack.c.b16 %v1023, %v1021
    %v1134 = vpack.c.b16 %v1026, %v1024
    %v1135 = vpack.c.b16 %v1027, %v1025
    %v1136 = vpack.c.b16 %v1030, %v1028
    %v1137 = vpack.c.b16 %v1031, %v1029
    %v1138 = vpack.c.b16 %v1034, %v1032
    %v1139 = vpack.c.b16 %v1035, %v1033
    %v1140 = vpack.c.b16 %v1038, %v1036
    %v1141 = vpack.c.b16 %v1039, %v1037
    %v1142 = vpack.c.b16 %v1042, %v1040
    %v1143 = vpack.c.b16 %v1043, %v1041
    %v1144 = vpack.c.b16 %v1046, %v1044
    %v1145 = vpack.c.b16 %v1047, %v1045
    %v1146 = vpack.c.b16 %v1050, %v1048
    %v1147 = vpack.c.b16 %v1051, %v1049
    %v1148 = vpack.c.b16 %v1054, %v1052
    %v1149 = vpack.c.b16 %v1055, %v1053
    %v1150 = vpack.c.b16 %v1058, %v1056
    %v1151 = vpack.c.b16 %v1059, %v1057
    %v1152 = vpack.c.b16 %v1062, %v1060
    %v1153 = vpack.c.b16 %v1063, %v1061
    %v1154 = vpack.c.b16 %v1066, %v1064
    %v1155 = vpack.c.b16 %v1067, %v1065
    %v1156 = vpack.c.b16 %v1070, %v1068
    %v1157 = vpack.c.b16 %v1071, %v1069
    %v1158 = vpack.c.b16 %v1074, %v1072
    %v1159 = vpack.c.b16 %v1075, %v1073
    %v1160 = vpack.c.b16 %v1078, %v1076
    %v1161 = vpack.c.b16 %v1079, %v1077
    %v1162 = vpack.c.b16 %v1082, %v1080
    %v1163 = vpack.c.b16 %v1083, %v1081
    %v1164 = vpack.c.b16 %v1086, %v1084
    %v1165 = vpack.c.b16 %v1087, %v1085
    %v1166 = vpack.c.b16 %v1090, %v1088
    %v1167 = vpack.c.b16 %v1091, %v1089
    %v1168 = vpack.c.b16 %v1094, %v1092
    %v1169 = vpack.c.b16 %v1095, %v1093
    %v1170 = vpack.c.b16 %v1098, %v1096
    %v1171 = vpack.c.b16 %v1099, %v1097
    %v1172 = vpack.c.b16 %v1102, %v1100
    %v1173 = vpack.c.b16 %v1103, %v1101
    %v1174 = vpack.c.b16 %v1106, %v1104
    %v1175 = vpack.c.b16 %v1107, %v1105
    %v1176 = vpack.c.b16 %v1110, %v1108
    %v1177 = vpack.c.b16 %v1111, %v1109
    %v1178 = vpack.c.b16 %v1114, %v1112
    %v1179 = vpack.c.b16 %v1115, %v1113
    %1244 = vmatprep.subr.bf16.mxu0 %v1131
    %1245 = vmatpush1.bf16.msra.mxu0 %v1130
    %1246 = vmatprep.subr.bf16.mxu0 %v1129
    %1247 = vmatpush1.bf16.msra.mxu0 %v1128
    %1248 = vmatprep.subr.bf16.mxu0 %v1127
    %1249 = vmatpush1.bf16.msra.mxu0 %v1126
    %1250 = vmatprep.subr.bf16.mxu0 %v1125
    %1251 = vmatpush1.bf16.msra.mxu0 %v1124
    %1252 = vmatprep.subr.bf16.mxu0 %v1123
    %1253 = vmatpush1.bf16.msra.mxu0 %v1122
    %1254 = vmatprep.subr.bf16.mxu0 %v1121
    %1255 = vmatpush1.bf16.msra.mxu0 %v1120
    %1256 = vmatprep.subr.bf16.mxu0 %v1119
    %1257 = vmatpush1.bf16.msra.mxu0 %v1118
    %1258 = vmatprep.subr.bf16.mxu0 %v1117
    %1259 = vmatpush1.bf16.msra.mxu0 %v1116
    %1260 = vmatprep.subr.bf16.mxu0 %v1147
    %1261 = vmatpush2.bf16.msra.mxu0 %v1146
    %1262 = vmatprep.subr.bf16.mxu0 %v1145
    %1263 = vmatpush2.bf16.msra.mxu0 %v1144
    %1264 = vmatprep.subr.bf16.mxu0 %v1143
    %1265 = vmatpush2.bf16.msra.mxu0 %v1142
    %1266 = vmatprep.subr.bf16.mxu0 %v1141
    %1267 = vmatpush2.bf16.msra.mxu0 %v1140
    %1268 = vmatprep.subr.bf16.mxu0 %v1139
    %1269 = vmatpush2.bf16.msra.mxu0 %v1138
    %1270 = vmatprep.subr.bf16.mxu0 %v1137
    %1271 = vmatpush2.bf16.msra.mxu0 %v1136
    %1272 = vmatprep.subr.bf16.mxu0 %v1135
    %1273 = vmatpush2.bf16.msra.mxu0 %v1134
    %1274 = vmatprep.subr.bf16.mxu0 %v1133
    %1275 = vmatpush2.bf16.msra.mxu0 %v1132
    %1276 = vmatprep.mubr.bf16.mxu0 %v845
    %1277 = vmatmul.mubr.bf16.gmra.mxu0 %v844
    %v1278 = vpop.f32.mrf.mxu0
    %v1279 = vadd.f32 %v917, %v1278
    %v1280 = vpop.f32.mrf.mxu0
    %v1281 = vadd.f32 %v921, %v1280
    %v1282 = vpop.f32.mrf.mxu0
    %v1283 = vpop.f32.mrf.mxu0
    %1284 = vdwg.mxu0
    %1285 = vmatprep.subr.bf16.mxu0 %v1163
    %1286 = vmatpush1.bf16.msra.mxu0 %v1162
    %1287 = vmatprep.subr.bf16.mxu0 %v1161
    %1288 = vmatpush1.bf16.msra.mxu0 %v1160
    %1289 = vmatprep.subr.bf16.mxu0 %v1159
    %1290 = vmatpush1.bf16.msra.mxu0 %v1158
    %1291 = vmatprep.subr.bf16.mxu0 %v1157
    %1292 = vmatpush1.bf16.msra.mxu0 %v1156
    %1293 = vmatprep.subr.bf16.mxu0 %v1155
    %1294 = vmatpush1.bf16.msra.mxu0 %v1154
    %1295 = vmatprep.subr.bf16.mxu0 %v1153
    %1296 = vmatpush1.bf16.msra.mxu0 %v1152
    %1297 = vmatprep.subr.bf16.mxu0 %v1151
    %1298 = vmatpush1.bf16.msra.mxu0 %v1150
    %1299 = vmatprep.subr.bf16.mxu0 %v1149
    %1300 = vmatpush1.bf16.msra.mxu0 %v1148
    %1301 = vmatprep.subr.bf16.mxu0 %v1179
    %1302 = vmatpush2.bf16.msra.mxu0 %v1178
    %1303 = vmatprep.subr.bf16.mxu0 %v1177
    %1304 = vmatpush2.bf16.msra.mxu0 %v1176
    %1305 = vmatprep.subr.bf16.mxu0 %v1175
    %1306 = vmatpush2.bf16.msra.mxu0 %v1174
    %1307 = vmatprep.subr.bf16.mxu0 %v1173
    %1308 = vmatpush2.bf16.msra.mxu0 %v1172
    %1309 = vmatprep.subr.bf16.mxu0 %v1171
    %1310 = vmatpush2.bf16.msra.mxu0 %v1170
    %1311 = vmatprep.subr.bf16.mxu0 %v1169
    %1312 = vmatpush2.bf16.msra.mxu0 %v1168
    %1313 = vmatprep.subr.bf16.mxu0 %v1167
    %1314 = vmatpush2.bf16.msra.mxu0 %v1166
    %1315 = vmatprep.subr.bf16.mxu0 %v1165
    %1316 = vmatpush2.bf16.msra.mxu0 %v1164
    %1317 = vmatprep.mubr.bf16.mxu0 %v847
    %1318 = vmatmul.mubr.bf16.gmra.mxu0 %v846
    %v1319 = vpop.f32.mrf.mxu0
    %v1320 = vadd.f32 %v1279, %v1319
    %v1321 = vpop.f32.mrf.mxu0
    %v1322 = vadd.f32 %v1281, %v1321
    %v1323 = vpop.f32.mrf.mxu0
    %v1324 = vpop.f32.mrf.mxu0
    %1325 = vdwg.mxu0
    %v1326 = vmax.f32 %v1320, 0.0
    %v1327 = vmax.f32 %v1322, 0.0
    %v1328 = vpack.c.bf16 %v1326, %v1326
    %v1329 = vpack.c.bf16 %v1327, %v1327
    %v1330 = vld [vmem:[#allocation8] sm:$0xf]
    %v1331 = vld [vmem:[#allocation8 + $0x4] sm:$0xf]
    %v1332 = vld [vmem:[#allocation8 + $0x8] sm:$0xf]
    %v1333 = vld [vmem:[#allocation8 + $0xc] sm:$0xf]
    %v1334 = vld [vmem:[#allocation8 + $0x10] sm:$0xf]
    %v1335 = vld [vmem:[#allocation8 + $0x14] sm:$0xf]
    %v1336 = vld [vmem:[#allocation8 + $0x18] sm:$0xf]
    %v1337 = vld [vmem:[#allocation8 + $0x1c] sm:$0xf]
    %v1338 = vld [vmem:[#allocation8 + $0x20] sm:$0xf]
    %v1339 = vld [vmem:[#allocation8 + $0x24] sm:$0xf]
    %v1340 = vld [vmem:[#allocation8 + $0x28] sm:$0xf]
    %v1341 = vld [vmem:[#allocation8 + $0x2c] sm:$0xf]
    %v1342 = vld [vmem:[#allocation8 + $0x30] sm:$0xf]
    %v1343 = vld [vmem:[#allocation8 + $0x34] sm:$0xf]
    %v1344 = vld [vmem:[#allocation8 + $0x38] sm:$0xf]
    %v1345 = vld [vmem:[#allocation8 + $0x3c] sm:$0xf]
    %v1346 = vld [vmem:[#allocation8 + $0x40] sm:$0xf]
    %v1347 = vld [vmem:[#allocation8 + $0x44] sm:$0xf]
    %v1348 = vld [vmem:[#allocation8 + $0x48] sm:$0xf]
    %v1349 = vld [vmem:[#allocation8 + $0x4c] sm:$0xf]
    %v1350 = vld [vmem:[#allocation8 + $0x50] sm:$0xf]
    %v1351 = vld [vmem:[#allocation8 + $0x54] sm:$0xf]
    %v1352 = vld [vmem:[#allocation8 + $0x58] sm:$0xf]
    %v1353 = vld [vmem:[#allocation8 + $0x5c] sm:$0xf]
    %v1354 = vld [vmem:[#allocation8 + $0x60] sm:$0xf]
    %v1355 = vld [vmem:[#allocation8 + $0x64] sm:$0xf]
    %v1356 = vld [vmem:[#allocation8 + $0x68] sm:$0xf]
    %v1357 = vld [vmem:[#allocation8 + $0x6c] sm:$0xf]
    %v1358 = vld [vmem:[#allocation8 + $0x70] sm:$0xf]
    %v1359 = vld [vmem:[#allocation8 + $0x74] sm:$0xf]
    %v1360 = vld [vmem:[#allocation8 + $0x78] sm:$0xf]
    %v1361 = vld [vmem:[#allocation8 + $0x7c] sm:$0xf]
    %v1362 = vld [vmem:[%s8] sm:$0x1]
    %v1364 = vlaneseq
    %v1365 = vshrl.u32 %v1364, 7
    %v1366 = vsub.s32 0, %v1365
    %v1367 = vrot.slane %v1362, %v1366
    %v1401 = vunpack.c.l.b16 %v1330
    %v1402 = vunpack.c.l.b16 %v1331
    %v1403 = vunpack.c.l.b16 %v1332
    %v1404 = vunpack.c.l.b16 %v1333
    %v1405 = vunpack.c.l.b16 %v1334
    %v1406 = vunpack.c.l.b16 %v1335
    %v1407 = vunpack.c.l.b16 %v1336
    %v1408 = vunpack.c.l.b16 %v1337
    %v1409 = vunpack.c.l.b16 %v1338
    %v1410 = vunpack.c.l.b16 %v1339
    %v1411 = vunpack.c.l.b16 %v1340
    %v1412 = vunpack.c.l.b16 %v1341
    %v1413 = vunpack.c.l.b16 %v1342
    %v1414 = vunpack.c.l.b16 %v1343
    %v1415 = vunpack.c.l.b16 %v1344
    %v1416 = vunpack.c.l.b16 %v1345
    %v1417 = vunpack.c.l.b16 %v1346
    %v1418 = vunpack.c.l.b16 %v1347
    %v1419 = vunpack.c.l.b16 %v1348
    %v1420 = vunpack.c.l.b16 %v1349
    %v1421 = vunpack.c.l.b16 %v1350
    %v1422 = vunpack.c.l.b16 %v1351
    %v1423 = vunpack.c.l.b16 %v1352
    %v1424 = vunpack.c.l.b16 %v1353
    %v1425 = vunpack.c.l.b16 %v1354
    %v1426 = vunpack.c.l.b16 %v1355
    %v1427 = vunpack.c.l.b16 %v1356
    %v1428 = vunpack.c.l.b16 %v1357
    %v1429 = vunpack.c.l.b16 %v1358
    %v1430 = vunpack.c.l.b16 %v1359
    %v1431 = vunpack.c.l.b16 %v1360
    %v1432 = vunpack.c.l.b16 %v1361
    %v1433 = vpack.c.b16 %v1402, %v1401
    %v1434 = vpack.c.b16 %v1404, %v1403
    %v1435 = vpack.c.b16 %v1406, %v1405
    %v1436 = vpack.c.b16 %v1408, %v1407
    %v1437 = vpack.c.b16 %v1410, %v1409
    %v1438 = vpack.c.b16 %v1412, %v1411
    %v1439 = vpack.c.b16 %v1414, %v1413
    %v1440 = vpack.c.b16 %v1416, %v1415
    %v1441 = vpack.c.b16 %v1418, %v1417
    %v1442 = vpack.c.b16 %v1420, %v1419
    %v1443 = vpack.c.b16 %v1422, %v1421
    %v1444 = vpack.c.b16 %v1424, %v1423
    %v1445 = vpack.c.b16 %v1426, %v1425
    %v1446 = vpack.c.b16 %v1428, %v1427
    %v1447 = vpack.c.b16 %v1430, %v1429
    %v1448 = vpack.c.b16 %v1432, %v1431
    %1465 = vmatprep.subr.bf16.mxu0 0
    %1466 = vmatpush1.bf16.msra.mxu0 %v1440
    %1467 = vmatprep.subr.bf16.mxu0 0
    %1468 = vmatpush1.bf16.msra.mxu0 %v1439
    %1469 = vmatprep.subr.bf16.mxu0 0
    %1470 = vmatpush1.bf16.msra.mxu0 %v1438
    %1471 = vmatprep.subr.bf16.mxu0 0
    %1472 = vmatpush1.bf16.msra.mxu0 %v1437
    %1473 = vmatprep.subr.bf16.mxu0 0
    %1474 = vmatpush1.bf16.msra.mxu0 %v1436
    %1475 = vmatprep.subr.bf16.mxu0 0
    %1476 = vmatpush1.bf16.msra.mxu0 %v1435
    %1477 = vmatprep.subr.bf16.mxu0 0
    %1478 = vmatpush1.bf16.msra.mxu0 %v1434
    %1479 = vmatprep.subr.bf16.mxu0 0
    %1480 = vmatpush1.bf16.msra.mxu0 %v1433
    %1481 = vmatprep.subr.bf16.mxu0 0
    %1482 = vmatpush2.bf16.msra.mxu0 %v1448
    %1483 = vmatprep.subr.bf16.mxu0 0
    %1484 = vmatpush2.bf16.msra.mxu0 %v1447
    %1485 = vmatprep.subr.bf16.mxu0 0
    %1486 = vmatpush2.bf16.msra.mxu0 %v1446
    %1487 = vmatprep.subr.bf16.mxu0 0
    %1488 = vmatpush2.bf16.msra.mxu0 %v1445
    %1489 = vmatprep.subr.bf16.mxu0 0
    %1490 = vmatpush2.bf16.msra.mxu0 %v1444
    %1491 = vmatprep.subr.bf16.mxu0 0
    %1492 = vmatpush2.bf16.msra.mxu0 %v1443
    %1493 = vmatprep.subr.bf16.mxu0 0
    %1494 = vmatpush2.bf16.msra.mxu0 %v1442
    %1495 = vmatprep.subr.bf16.mxu0 0
    %1496 = vmatpush2.bf16.msra.mxu0 %v1441
    %1497 = vmatprep.mubr.bf16.mxu0 %v1329
    %1498 = vmatmul.mubr.bf16.gmra.mxu0 %v1328
    %v1499 = vpop.f32.mrf.mxu0
    %v1500 = vadd.f32 %v1367, %v1499
    %v1501 = vpop.f32.mrf.mxu0
    %v1502 = vpop.f32.mrf.mxu0
    %v1503 = vpop.f32.mrf.mxu0
    %1504 = vdwg.mxu0
    %v1505 = vrcp.pop %v89
    %1507 = vset.pattern.permute.xlu0 2
    %1508 = vperm.xlu0 %1507, %v1505
    %v1509 = vpop.permute.xlu0 %1508
    %v1511 = vmul.f32 %v1500, %v1509
    %1512 = vst [vmem:[#allocation10] sm:$0xff] %v1511
    // Predicated region
    $region54: #{tpu_custom_call.1} parent=1 // pred_check
      _
    $region55: #{tpu_custom_call.1} parent=1 // pred_check_branch
      %1514 = sbr.rel (0) target = $region57
    $region56: #{tpu_custom_call.1} parent=1 // pred_region
      %s1516 = ssub.s32 128, 128
      %1517 = vsyncadd [#allocation4], %s1516
      %s1519 = sshll.u32 [#allocation10], 4
      %s1520 = int_to_ptr.vmem [resolvable:$true] %s1519
      %1522 = dma.vmem_to_hbm [thread:$0]  %s1520, 128, %s9, [#allocation4]
    $region57: #{tpu_custom_call.1} parent=1 // pred_fallthru
      _
    // Predicated region
    $region58: #{tpu_custom_call.1} parent=1 // pred_check
      _
    $region59: #{tpu_custom_call.1} parent=1 // pred_check_branch
      %1524 = sbr.rel (0) target = $region61
    $region60: #{tpu_custom_call.1} parent=1 // pred_region
      %1525 = dma.done [#allocation4], 128
    $region61: #{tpu_custom_call.1} parent=1 // pred_fallthru
      _
    %1526 = vsyncpa [#allocation3], 1
    %1527 = vsyncpa [#allocation6], 1
    %1528 = vsyncpa [#allocation9], 1
    %1529 = vsyncpa [#allocation4], 1

</llo_original>
